<compile_context>
chip_gen: v6e
topology: v6e:2x2x1
jax: 0.10.0
libtpu: 0.0.40
codegen_flags: <defaults>
</compile_context>

<pallas_src>
import jax
import jax.numpy as jnp
from jax.experimental import pallas as pl
from jax.experimental.pallas import tpu as pltpu

# ---- small synthetic config (original: max_length=115, GPT-2 base config) ----
B = 2                     # batch
S = 8                     # sequence length (original max_length = 115)
H = 32                    # hidden size
N_HEADS = 2
HEAD_DIM = H // N_HEADS
MLP = 4 * H
N_LAYERS = 2
VOCAB = 64
MAX_POS = 128
N_SENDER_CHOICES = 16     # original default 10000
NUM_LABELS = N_SENDER_CHOICES * 9          # 144
NUM_LABELS_PAD = 256                       # lane-dense store (multiple of 128)
B_PAD = 8                                  # sublane-full output rows
LN_EPS = 1e-5


# ------------------------------ kernel helpers ------------------------------
def _layer_norm(x, g, b):
    mu = jnp.mean(x, axis=-1, keepdims=True)
    var = jnp.mean((x - mu) ** 2, axis=-1, keepdims=True)
    return (x - mu) * jax.lax.rsqrt(var + LN_EPS) * g + b


def _gelu_new(x):
    # GPT-2 "gelu_new" (tanh approximation). Kept f32 so the same kernel is
    # correct on v5e (no bf16 VPU/EUP); on v6e/v7x this could be bf16.
    return 0.5 * x * (1.0 + jnp.tanh(0.7978845608028654 *
                                     (x + 0.044715 * x * x * x)))


# --------------------------- fused forward kernel ----------------------------
def sender_fused_kernel(seq_last_ref,                          # SMEM (B,) int32
                        x_ref, mask_ref,
                        ln1_g_ref, ln1_b_ref, w_qkv_ref, b_qkv_ref,
                        w_ao_ref, b_ao_ref, ln2_g_ref, ln2_b_ref,
                        w_fc_ref, b_fc_ref, w_mo_ref, b_mo_ref,
                        lnf_g_ref, lnf_b_ref, w_score_ref,
                        out_ref,
                        x_scratch, pooled_scratch):
    # Residual stream stays in VMEM/vregs for the whole forward (batch folded).
    x = x_ref[...].reshape(B * S, H)                            # (B*S, H) f32

    # Causal + key-padding mask, hoisted across layers; built ONCE as (B,S,S)
    # and shared across heads by broadcasting (no per-head duplication/concat).
    row = jax.lax.broadcasted_iota(jnp.int32, (S, S), 0)
    col = jax.lax.broadcasted_iota(jnp.int32, (S, S), 1)
    causal = col <= row                                         # (S, S)
    keymask = mask_ref[...] > 0.5                               # (B, S)
    allow = jnp.logical_and(causal[None, :, :], keymask[:, None, :])  # (B,S,S)
    neg = jnp.float32(-1e9)
    scale = jnp.float32(1.0 / (HEAD_DIM ** 0.5))

    for l in range(N_LAYERS):
        # ---- LN1 + single fused QKV matmul (bf16 MXU inputs, f32 accumulate) --
        h1 = _layer_norm(x, ln1_g_ref[l], ln1_b_ref[l])
        qkv = jnp.dot(h1.astype(jnp.bfloat16), w_qkv_ref[l],
                      preferred_element_type=jnp.float32) + b_qkv_ref[l]
        qkv3 = qkv.reshape(B, S, 3 * H)      # leading-dim reshape, minor intact

        # ---- attention: per-head contiguous lane slices, batched-over-B
        #      einsums, head re-merge fused into the output projection
        #      (sum over heads of ctx_h @ W_ao[h]) -- no concatenates. ----
        w_ao_l = w_ao_ref[l]                                    # (NH, HD, H) bf16
        attn_out = jnp.zeros((B * S, H), jnp.float32)
        for h in range(N_HEADS):
            base = h * HEAD_DIM
            qh = qkv3[:, :, base:base + HEAD_DIM].astype(jnp.bfloat16)
            kh = qkv3[:, :, H + base:H + base + HEAD_DIM].astype(jnp.bfloat16)
            vh = qkv3[:, :, 2 * H + base:2 * H + base + HEAD_DIM
                      ].astype(jnp.bfloat16)                    # (B, S, HD)

            s_h = jnp.einsum('bqd,bkd->bqk', qh, kh,
                             preferred_element_type=jnp.float32) * scale
            s_h = jnp.where(allow, s_h, neg)
            m = jnp.max(s_h, axis=-1, keepdims=True)
            p = jnp.exp(s_h - m)
            p = p * pl.reciprocal(jnp.sum(p, axis=-1, keepdims=True),
                                  approx=True)
            ctx_h = jnp.einsum('bqk,bkd->bqd', p.astype(jnp.bfloat16), vh,
                               preferred_element_type=jnp.float32)  # (B,S,HD)
            attn_out = attn_out + jnp.dot(
                ctx_h.reshape(B * S, HEAD_DIM).astype(jnp.bfloat16), w_ao_l[h],
                preferred_element_type=jnp.float32)             # (B*S, H)
        x = x + attn_out + b_ao_ref[l]

        # ---- LN2 + GELU MLP ----
        h2 = _layer_norm(x, ln2_g_ref[l], ln2_b_ref[l])
        fc = jnp.dot(h2.astype(jnp.bfloat16), w_fc_ref[l],
                     preferred_element_type=jnp.float32) + b_fc_ref[l]
        fc = _gelu_new(fc)
        mo = jnp.dot(fc.astype(jnp.bfloat16), w_mo_ref[l],
                     preferred_element_type=jnp.float32) + b_mo_ref[l]
        x = x + mo

    # ---- last-non-pad-token pooling: dynamic row reads driven by SMEM ----
    x_scratch[...] = x                                          # (B*S, H) VMEM
    pooled_scratch[...] = jnp.zeros((B_PAD, H), jnp.float32)    # pad rows = 0
    for b in range(B):
        r = b * S + seq_last_ref[b]                             # SMEM scalar
        pooled_scratch[pl.ds(b, 1), :] = x_scratch[pl.ds(r, 1), :]

    # ---- final LN + classification head; (8, 256) sublane-full/lane-dense ----
    hf = _layer_norm(pooled_scratch[...], lnf_g_ref[...], lnf_b_ref[...])
    out_ref[...] = jnp.dot(hf.astype(jnp.bfloat16), w_score_ref[...],
                           preferred_element_type=jnp.float32)  # (8, 256)


_WEIGHT_KEYS = ("ln1_g", "ln1_b", "w_qkv", "b_qkv", "w_ao", "b_ao",
                "ln2_g", "ln2_b", "w_fc", "b_fc", "w_mo", "b_mo",
                "lnf_g", "lnf_b", "w_score")


def sender_gpt2_fused(x_emb, mask, seq_last, params):
    """One pallas_call for the whole post-embedding forward.

    x_emb: (B,S,H) f32, mask: (B,S) f32, seq_last: (B,) int32.
    Returns padded logits (B_PAD, NUM_LABELS_PAD) f32.
    """
    weights = [params[k] for k in _WEIGHT_KEYS]

    def full_spec(arr):
        nd = arr.ndim
        return pl.BlockSpec(arr.shape, lambda i, _nd=nd: (0,) * _nd)

    in_specs = ([pl.BlockSpec(memory_space=pltpu.MemorySpace.SMEM),   # seq_last
                 full_spec(x_emb), full_spec(mask)]
                + [full_spec(w) for w in weights])

    # Single grid step: at B=2/S=8 the whole forward is one invocation (per-step
    # overhead dominates any split).  At the real GPT-2-base config this must
    # become a layer-streamed, double-buffered pipeline (weights >> VMEM) with
    # a 'parallel' batch axis to use v7x's second TensorCore.
    return pl.pallas_call(
        sender_fused_kernel,
        out_shape=jax.ShapeDtypeStruct((B_PAD, NUM_LABELS_PAD), jnp.float32),
        grid=(1,),
        in_specs=in_specs,
        out_specs=pl.BlockSpec((B_PAD, NUM_LABELS_PAD), lambda i: (0, 0)),
        scratch_shapes=[pltpu.VMEM((B * S, H), jnp.float32),    # x for pooling
                        pltpu.VMEM((B_PAD, H), jnp.float32)],   # pooled rows
        compiler_params=pltpu.CompilerParams(
            dimension_semantics=("arbitrary",),
            vmem_limit_bytes=32 * 1024 * 1024),
    )(seq_last, x_emb, mask, *weights)


# ------------------------------ parameter init -------------------------------
def init_params(key):
    ks = jax.random.split(key, 8)
    std = 0.02
    f32, bf16 = jnp.float32, jnp.bfloat16

    def nrm(k, shape, dtype):
        return (jax.random.normal(k, shape, f32) * std).astype(dtype)

    # classification head (no bias in HF score layer), zero-padded to 256 lanes
    w_score = nrm(ks[2], (H, NUM_LABELS), f32)
    w_score = jnp.pad(w_score, ((0, 0), (0, NUM_LABELS_PAD - NUM_LABELS)))

    return {
        # embeddings (looked up by XLA outside the kernel)
        "wte": nrm(ks[0], (VOCAB, H), f32),
        "wpe": nrm(ks[1], (MAX_POS, H), f32),
        # per-layer weights stacked on a leading layer axis; matmul weights bf16
        "ln1_g": jnp.ones((N_LAYERS, 1, H), f32),
        "ln1_b": jnp.zeros((N_LAYERS, 1, H), f32),
        "w_qkv": nrm(ks[3], (N_LAYERS, H, 3 * H), bf16),
        "b_qkv": jnp.zeros((N_LAYERS, 1, 3 * H), f32),
        # w_ao stored per-head (L, NH, HD, H): a pure reshape of the GPT-2
        # (H, H) c_proj weight (input rows are head-major), enabling the fused
        # head-recombine projection inside the kernel with no concat.
        "w_ao": nrm(ks[4], (N_LAYERS, N_HEADS, HEAD_DIM, H), bf16),
        "b_ao": jnp.zeros((N_LAYERS, 1, H), f32),
        "ln2_g": jnp.ones((N_LAYERS, 1, H), f32),
        "ln2_b": jnp.zeros((N_LAYERS, 1, H), f32),
        "w_fc": nrm(ks[5], (N_LAYERS, H, MLP), bf16),
        "b_fc": jnp.zeros((N_LAYERS, 1, MLP), f32),
        "w_mo": nrm(ks[6], (N_LAYERS, MLP, H), bf16),
        "b_mo": jnp.zeros((N_LAYERS, 1, H), f32),
        # final LN + classification head
        "lnf_g": jnp.ones((1, H), f32),
        "lnf_b": jnp.zeros((1, H), f32),
        "w_score": w_score.astype(bf16),
    }


# --------------------------------- forward -----------------------------------
@jax.jit
def sender_forward(params, input_ids, attention_mask):
    """Equivalent of SenderModel.forward after tokenization.

    Returns (q_logits [B, NUM_LABELS], number [B], word_index [B]).
    """
    # TODO(synk): tokenizer / board2stringsender / word-corpus lookup are string
    # ops with no Pallas equivalent; inputs are pre-tokenized ids + mask.
    positions = jnp.arange(S, dtype=jnp.int32)
    x = params["wte"][input_ids] + params["wpe"][positions][None, :, :]
    mask = attention_mask.astype(jnp.float32)
    seq_last = jnp.sum(attention_mask, axis=-1).astype(jnp.int32) - 1   # (B,)

    q_logits_pad = sender_gpt2_fused(x, mask, seq_last, params)
    q_logits = q_logits_pad[:B, :NUM_LABELS]        # drop sublane/lane padding

    # generate_discrete_answers (numeric part)
    max_index = jnp.argmax(q_logits, axis=-1)
    number = max_index // N_SENDER_CHOICES + 1
    word_index = max_index % N_SENDER_CHOICES
    return q_logits, number, word_index


# ----------------------------------- main ------------------------------------
if __name__ == "__main__":
    key = jax.random.PRNGKey(0)
    k_param, k_ids = jax.random.split(key)
    params = init_params(k_param)

    input_ids = jax.random.randint(k_ids, (B, S), 0, VOCAB, dtype=jnp.int32)
    # second sequence is padded after 5 tokens
    attention_mask = jnp.array([[1, 1, 1, 1, 1, 1, 1, 1],
                                [1, 1, 1, 1, 1, 0, 0, 0]], dtype=jnp.int32)

    q_logits, number, word_index = sender_forward(params, input_ids,
                                                  attention_mask)
    jax.block_until_ready(q_logits)
    jax.block_until_ready(number)
    jax.block_until_ready(word_index)

    assert q_logits.shape == (B, NUM_LABELS)
    assert number.shape == (B,) and word_index.shape == (B,)
    assert bool(jnp.all(jnp.isfinite(q_logits)))
    print("KERNEL_OK")
</pallas_src>

<mosaic_0001>
module attributes {stable_mosaic.version = 11 : i64} {
  func.func @sender_fused_kernel(%arg0: i32, %arg1: memref<2xi32, #tpu.memory_space<smem>>, %arg2: memref<2x8x32xf32, #tpu.memory_space<vmem>>, %arg3: memref<2x8xf32, #tpu.memory_space<vmem>>, %arg4: memref<2x1x32xf32, #tpu.memory_space<vmem>>, %arg5: memref<2x1x32xf32, #tpu.memory_space<vmem>>, %arg6: memref<2x32x96xbf16, #tpu.memory_space<vmem>>, %arg7: memref<2x1x96xf32, #tpu.memory_space<vmem>>, %arg8: memref<2x2x16x32xbf16, #tpu.memory_space<vmem>>, %arg9: memref<2x1x32xf32, #tpu.memory_space<vmem>>, %arg10: memref<2x1x32xf32, #tpu.memory_space<vmem>>, %arg11: memref<2x1x32xf32, #tpu.memory_space<vmem>>, %arg12: memref<2x32x128xbf16, #tpu.memory_space<vmem>>, %arg13: memref<2x1x128xf32, #tpu.memory_space<vmem>>, %arg14: memref<2x128x32xbf16, #tpu.memory_space<vmem>>, %arg15: memref<2x1x32xf32, #tpu.memory_space<vmem>>, %arg16: memref<1x32xf32, #tpu.memory_space<vmem>>, %arg17: memref<1x32xf32, #tpu.memory_space<vmem>>, %arg18: memref<32x256xbf16, #tpu.memory_space<vmem>>, %arg19: memref<8x256xf32, #tpu.memory_space<vmem>>, %arg20: memref<16x32xf32, #tpu.memory_space<vmem>>, %arg21: memref<8x32xf32, #tpu.memory_space<vmem>>) attributes {dimension_semantics = [#tpu.dimension_semantics<arbitrary>], iteration_bounds = array<i64: 1>, scalar_prefetch = 0 : i64, scratch_operands = 2 : i64, tpu.core_type = #tpu.core_type<tc>, window_params = [{transform_indices = @transform_0, window_bounds = array<i64: 2>}, {pipeline_mode = #tpu.pipeline_mode<synchronous>, transform_indices = @transform_1, window_bounds = array<i64: 2, 8, 32>}, {pipeline_mode = #tpu.pipeline_mode<synchronous>, transform_indices = @transform_2, window_bounds = array<i64: 2, 8>}, {pipeline_mode = #tpu.pipeline_mode<synchronous>, transform_indices = @transform_3, window_bounds = array<i64: 2, 1, 32>}, {pipeline_mode = #tpu.pipeline_mode<synchronous>, transform_indices = @transform_4, window_bounds = array<i64: 2, 1, 32>}, {pipeline_mode = #tpu.pipeline_mode<synchronous>, transform_indices = @transform_5, window_bounds = array<i64: 2, 32, 96>}, {pipeline_mode = #tpu.pipeline_mode<synchronous>, transform_indices = @transform_6, window_bounds = array<i64: 2, 1, 96>}, {pipeline_mode = #tpu.pipeline_mode<synchronous>, transform_indices = @transform_7, window_bounds = array<i64: 2, 2, 16, 32>}, {pipeline_mode = #tpu.pipeline_mode<synchronous>, transform_indices = @transform_8, window_bounds = array<i64: 2, 1, 32>}, {pipeline_mode = #tpu.pipeline_mode<synchronous>, transform_indices = @transform_9, window_bounds = array<i64: 2, 1, 32>}, {pipeline_mode = #tpu.pipeline_mode<synchronous>, transform_indices = @transform_10, window_bounds = array<i64: 2, 1, 32>}, {pipeline_mode = #tpu.pipeline_mode<synchronous>, transform_indices = @transform_11, window_bounds = array<i64: 2, 32, 128>}, {pipeline_mode = #tpu.pipeline_mode<synchronous>, transform_indices = @transform_12, window_bounds = array<i64: 2, 1, 128>}, {pipeline_mode = #tpu.pipeline_mode<synchronous>, transform_indices = @transform_13, window_bounds = array<i64: 2, 128, 32>}, {pipeline_mode = #tpu.pipeline_mode<synchronous>, transform_indices = @transform_14, window_bounds = array<i64: 2, 1, 32>}, {pipeline_mode = #tpu.pipeline_mode<synchronous>, transform_indices = @transform_15, window_bounds = array<i64: 1, 32>}, {pipeline_mode = #tpu.pipeline_mode<synchronous>, transform_indices = @transform_16, window_bounds = array<i64: 1, 32>}, {pipeline_mode = #tpu.pipeline_mode<synchronous>, transform_indices = @transform_17, window_bounds = array<i64: 32, 256>}, {pipeline_mode = #tpu.pipeline_mode<synchronous>, transform_indices = @transform_18, window_bounds = array<i64: 8, 256>}]} {
    %c0 = arith.constant 0 : index
    %c0_0 = arith.constant 0 : index
    %c0_1 = arith.constant 0 : index
    %0 = vector.load %arg2[%c0, %c0_0, %c0_1] : memref<2x8x32xf32, #tpu.memory_space<vmem>>, vector<2x8x32xf32>
    %1 = vector.shape_cast %0 : vector<2x8x32xf32> to vector<16x32xf32>
    %2 = tpu.iota {dimensions = array<i32: 0>} : vector<8x8xi32>
    %3 = tpu.iota {dimensions = array<i32: 1>} : vector<8x8xi32>
    %4 = arith.cmpi sle, %3, %2 : vector<8x8xi32>
    %c0_2 = arith.constant 0 : index
    %c0_3 = arith.constant 0 : index
    %5 = vector.load %arg3[%c0_2, %c0_3] : memref<2x8xf32, #tpu.memory_space<vmem>>, vector<2x8xf32>
    %cst = arith.constant 5.000000e-01 : f32
    %6 = vector.broadcast %cst : f32 to vector<2x8xf32>
    %7 = arith.cmpf ogt, %5, %6 : vector<2x8xf32>
    %8 = vector.shape_cast %4 : vector<8x8xi1> to vector<1x8x8xi1>
    %9 = vector.shape_cast %7 : vector<2x8xi1> to vector<2x1x8xi1>
    %10 = vector.broadcast %8 : vector<1x8x8xi1> to vector<2x8x8xi1>
    %11 = vector.broadcast %9 : vector<2x1x8xi1> to vector<2x8x8xi1>
    %12 = arith.andi %10, %11 : vector<2x8x8xi1>
    %c0_4 = arith.constant 0 : index
    %c0_5 = arith.constant 0 : index
    %c0_6 = arith.constant 0 : index
    %13 = vector.load %arg4[%c0_4, %c0_5, %c0_6] : memref<2x1x32xf32, #tpu.memory_space<vmem>>, vector<1x1x32xf32>
    %14 = vector.shape_cast %13 : vector<1x1x32xf32> to vector<1x32xf32>
    %c0_7 = arith.constant 0 : index
    %c0_8 = arith.constant 0 : index
    %c0_9 = arith.constant 0 : index
    %15 = vector.load %arg5[%c0_7, %c0_8, %c0_9] : memref<2x1x32xf32, #tpu.memory_space<vmem>>, vector<1x1x32xf32>
    %16 = vector.shape_cast %15 : vector<1x1x32xf32> to vector<1x32xf32>
    %cst_10 = arith.constant dense<0.000000e+00> : vector<16xf32>
    %17 = vector.multi_reduction <add>, %1, %cst_10 [1] : vector<16x32xf32> to vector<16xf32>
    %18 = vector.shape_cast %17 : vector<16xf32> to vector<16x1xf32>
    %cst_11 = arith.constant 3.200000e+01 : f32
    %19 = vector.broadcast %cst_11 : f32 to vector<16x1xf32>
    %20 = arith.divf %18, %19 : vector<16x1xf32>
    %21 = vector.broadcast %20 : vector<16x1xf32> to vector<16x32xf32>
    %22 = arith.subf %1, %21 : vector<16x32xf32>
    %23 = arith.mulf %22, %22 : vector<16x32xf32>
    %cst_12 = arith.constant dense<0.000000e+00> : vector<16xf32>
    %24 = vector.multi_reduction <add>, %23, %cst_12 [1] : vector<16x32xf32> to vector<16xf32>
    %25 = vector.shape_cast %24 : vector<16xf32> to vector<16x1xf32>
    %cst_13 = arith.constant 3.200000e+01 : f32
    %26 = vector.broadcast %cst_13 : f32 to vector<16x1xf32>
    %27 = arith.divf %25, %26 : vector<16x1xf32>
    %28 = vector.broadcast %20 : vector<16x1xf32> to vector<16x32xf32>
    %29 = arith.subf %1, %28 : vector<16x32xf32>
    %cst_14 = arith.constant 9.99999974E-6 : f32
    %30 = vector.broadcast %cst_14 : f32 to vector<16x1xf32>
    %31 = arith.addf %27, %30 : vector<16x1xf32>
    %32 = math.rsqrt %31 : vector<16x1xf32>
    %33 = vector.broadcast %32 : vector<16x1xf32> to vector<16x32xf32>
    %34 = arith.mulf %29, %33 : vector<16x32xf32>
    %35 = vector.broadcast %14 : vector<1x32xf32> to vector<16x32xf32>
    %36 = arith.mulf %34, %35 : vector<16x32xf32>
    %37 = vector.broadcast %16 : vector<1x32xf32> to vector<16x32xf32>
    %38 = arith.addf %36, %37 : vector<16x32xf32>
    %39 = arith.truncf %38 : vector<16x32xf32> to vector<16x32xbf16>
    %c0_15 = arith.constant 0 : index
    %c0_16 = arith.constant 0 : index
    %c0_17 = arith.constant 0 : index
    %40 = vector.load %arg6[%c0_15, %c0_16, %c0_17] : memref<2x32x96xbf16, #tpu.memory_space<vmem>>, vector<1x32x96xbf16>
    %41 = vector.shape_cast %40 : vector<1x32x96xbf16> to vector<32x96xbf16>
    %cst_18 = arith.constant dense<0.000000e+00> : vector<16x96xf32>
    %42 = tpu.matmul %39, %41, %cst_18 {dimension_numbers = #tpu.dot_dimension_numbers<[1], [0], [0], [1], [0, 0, 1, 1], [], []>} : vector<16x32xbf16>, vector<32x96xbf16>, vector<16x96xf32> -> vector<16x96xf32>
    %c0_19 = arith.constant 0 : index
    %c0_20 = arith.constant 0 : index
    %c0_21 = arith.constant 0 : index
    %43 = vector.load %arg7[%c0_19, %c0_20, %c0_21] : memref<2x1x96xf32, #tpu.memory_space<vmem>>, vector<1x1x96xf32>
    %44 = vector.shape_cast %43 : vector<1x1x96xf32> to vector<1x96xf32>
    %45 = vector.broadcast %44 : vector<1x96xf32> to vector<16x96xf32>
    %46 = arith.addf %42, %45 : vector<16x96xf32>
    %47 = vector.shape_cast %46 : vector<16x96xf32> to vector<2x8x96xf32>
    %c0_22 = arith.constant 0 : index
    %c0_23 = arith.constant 0 : index
    %c0_24 = arith.constant 0 : index
    %c0_25 = arith.constant 0 : index
    %48 = vector.load %arg8[%c0_22, %c0_23, %c0_24, %c0_25] : memref<2x2x16x32xbf16, #tpu.memory_space<vmem>>, vector<1x2x16x32xbf16>
    %49 = vector.shape_cast %48 : vector<1x2x16x32xbf16> to vector<2x16x32xbf16>
    %cst_26 = arith.constant 0.000000e+00 : f32
    %50 = vector.broadcast %cst_26 : f32 to vector<16x32xf32>
    %51 = vector.extract_strided_slice %47 {offsets = [0, 0, 0], sizes = [2, 8, 16], strides = [1, 1, 1]} : vector<2x8x96xf32> to vector<2x8x16xf32>
    %52 = arith.truncf %51 : vector<2x8x16xf32> to vector<2x8x16xbf16>
    %53 = vector.extract_strided_slice %47 {offsets = [0, 0, 32], sizes = [2, 8, 16], strides = [1, 1, 1]} : vector<2x8x96xf32> to vector<2x8x16xf32>
    %54 = arith.truncf %53 : vector<2x8x16xf32> to vector<2x8x16xbf16>
    %55 = vector.extract_strided_slice %47 {offsets = [0, 0, 64], sizes = [2, 8, 16], strides = [1, 1, 1]} : vector<2x8x96xf32> to vector<2x8x16xf32>
    %56 = arith.truncf %55 : vector<2x8x16xf32> to vector<2x8x16xbf16>
    "tpu.trace_start"() <{level = 10 : i32, message = "bqd,bkd->bqk"}> : () -> ()
    %cst_27 = arith.constant dense<0.000000e+00> : vector<2x8x8xf32>
    %57 = tpu.matmul %52, %54, %cst_27 {dimension_numbers = #tpu.dot_dimension_numbers<[2], [2], [1], [1], [0, 0, 0, 1, 1, 1], [0], [0]>} : vector<2x8x16xbf16>, vector<2x8x16xbf16>, vector<2x8x8xf32> -> vector<2x8x8xf32>
    "tpu.trace_stop"() : () -> ()
    %cst_28 = arith.constant 2.500000e-01 : f32
    %58 = vector.broadcast %cst_28 : f32 to vector<2x8x8xf32>
    %59 = arith.mulf %57, %58 : vector<2x8x8xf32>
    %cst_29 = arith.constant -1.000000e+09 : f32
    %60 = vector.broadcast %cst_29 : f32 to vector<2x8x8xf32>
    %61 = arith.select %12, %59, %60 : vector<2x8x8xi1>, vector<2x8x8xf32>
    %cst_30 = arith.constant dense<0xFF800000> : vector<2x8xf32>
    %62 = vector.multi_reduction <maximumf>, %61, %cst_30 [2] : vector<2x8x8xf32> to vector<2x8xf32>
    %63 = vector.shape_cast %62 : vector<2x8xf32> to vector<2x8x1xf32>
    %64 = vector.broadcast %63 : vector<2x8x1xf32> to vector<2x8x8xf32>
    %65 = arith.subf %61, %64 : vector<2x8x8xf32>
    %66 = math.exp %65 : vector<2x8x8xf32>
    %cst_31 = arith.constant dense<0.000000e+00> : vector<2x8xf32>
    %67 = vector.multi_reduction <add>, %66, %cst_31 [2] : vector<2x8x8xf32> to vector<2x8xf32>
    %68 = vector.shape_cast %67 : vector<2x8xf32> to vector<2x8x1xf32>
    %69 = tpu.reciprocal %68 {approx = true} : vector<2x8x1xf32> -> vector<2x8x1xf32>
    %70 = vector.broadcast %69 : vector<2x8x1xf32> to vector<2x8x8xf32>
    %71 = arith.mulf %66, %70 : vector<2x8x8xf32>
    %72 = arith.truncf %71 : vector<2x8x8xf32> to vector<2x8x8xbf16>
    "tpu.trace_start"() <{level = 10 : i32, message = "bqk,bkd->bqd"}> : () -> ()
    %cst_32 = arith.constant dense<0.000000e+00> : vector<2x8x16xf32>
    %73 = tpu.matmul %72, %56, %cst_32 {dimension_numbers = #tpu.dot_dimension_numbers<[2], [1], [1], [2], [0, 0, 0, 1, 1, 2], [0], [0]>} : vector<2x8x8xbf16>, vector<2x8x16xbf16>, vector<2x8x16xf32> -> vector<2x8x16xf32>
    "tpu.trace_stop"() : () -> ()
    %74 = vector.shape_cast %73 : vector<2x8x16xf32> to vector<16x16xf32>
    %75 = arith.truncf %74 : vector<16x16xf32> to vector<16x16xbf16>
    %76 = vector.extract_strided_slice %49 {offsets = [0, 0, 0], sizes = [1, 16, 32], strides = [1, 1, 1]} : vector<2x16x32xbf16> to vector<1x16x32xbf16>
    %77 = vector.shape_cast %76 : vector<1x16x32xbf16> to vector<16x32xbf16>
    %cst_33 = arith.constant dense<0.000000e+00> : vector<16x32xf32>
    %78 = tpu.matmul %75, %77, %cst_33 {dimension_numbers = #tpu.dot_dimension_numbers<[1], [0], [0], [1], [0, 0, 1, 1], [], []>} : vector<16x16xbf16>, vector<16x32xbf16>, vector<16x32xf32> -> vector<16x32xf32>
    %79 = arith.addf %50, %78 : vector<16x32xf32>
    %80 = vector.extract_strided_slice %47 {offsets = [0, 0, 16], sizes = [2, 8, 16], strides = [1, 1, 1]} : vector<2x8x96xf32> to vector<2x8x16xf32>
    %81 = arith.truncf %80 : vector<2x8x16xf32> to vector<2x8x16xbf16>
    %82 = vector.extract_strided_slice %47 {offsets = [0, 0, 48], sizes = [2, 8, 16], strides = [1, 1, 1]} : vector<2x8x96xf32> to vector<2x8x16xf32>
    %83 = arith.truncf %82 : vector<2x8x16xf32> to vector<2x8x16xbf16>
    %84 = vector.extract_strided_slice %47 {offsets = [0, 0, 80], sizes = [2, 8, 16], strides = [1, 1, 1]} : vector<2x8x96xf32> to vector<2x8x16xf32>
    %85 = arith.truncf %84 : vector<2x8x16xf32> to vector<2x8x16xbf16>
    "tpu.trace_start"() <{level = 10 : i32, message = "bqd,bkd->bqk"}> : () -> ()
    %cst_34 = arith.constant dense<0.000000e+00> : vector<2x8x8xf32>
    %86 = tpu.matmul %81, %83, %cst_34 {dimension_numbers = #tpu.dot_dimension_numbers<[2], [2], [1], [1], [0, 0, 0, 1, 1, 1], [0], [0]>} : vector<2x8x16xbf16>, vector<2x8x16xbf16>, vector<2x8x8xf32> -> vector<2x8x8xf32>
    "tpu.trace_stop"() : () -> ()
    %cst_35 = arith.constant 2.500000e-01 : f32
    %87 = vector.broadcast %cst_35 : f32 to vector<2x8x8xf32>
    %88 = arith.mulf %86, %87 : vector<2x8x8xf32>
    %cst_36 = arith.constant -1.000000e+09 : f32
    %89 = vector.broadcast %cst_36 : f32 to vector<2x8x8xf32>
    %90 = arith.select %12, %88, %89 : vector<2x8x8xi1>, vector<2x8x8xf32>
    %cst_37 = arith.constant dense<0xFF800000> : vector<2x8xf32>
    %91 = vector.multi_reduction <maximumf>, %90, %cst_37 [2] : vector<2x8x8xf32> to vector<2x8xf32>
    %92 = vector.shape_cast %91 : vector<2x8xf32> to vector<2x8x1xf32>
    %93 = vector.broadcast %92 : vector<2x8x1xf32> to vector<2x8x8xf32>
    %94 = arith.subf %90, %93 : vector<2x8x8xf32>
    %95 = math.exp %94 : vector<2x8x8xf32>
    %cst_38 = arith.constant dense<0.000000e+00> : vector<2x8xf32>
    %96 = vector.multi_reduction <add>, %95, %cst_38 [2] : vector<2x8x8xf32> to vector<2x8xf32>
    %97 = vector.shape_cast %96 : vector<2x8xf32> to vector<2x8x1xf32>
    %98 = tpu.reciprocal %97 {approx = true} : vector<2x8x1xf32> -> vector<2x8x1xf32>
    %99 = vector.broadcast %98 : vector<2x8x1xf32> to vector<2x8x8xf32>
    %100 = arith.mulf %95, %99 : vector<2x8x8xf32>
    %101 = arith.truncf %100 : vector<2x8x8xf32> to vector<2x8x8xbf16>
    "tpu.trace_start"() <{level = 10 : i32, message = "bqk,bkd->bqd"}> : () -> ()
    %cst_39 = arith.constant dense<0.000000e+00> : vector<2x8x16xf32>
    %102 = tpu.matmul %101, %85, %cst_39 {dimension_numbers = #tpu.dot_dimension_numbers<[2], [1], [1], [2], [0, 0, 0, 1, 1, 2], [0], [0]>} : vector<2x8x8xbf16>, vector<2x8x16xbf16>, vector<2x8x16xf32> -> vector<2x8x16xf32>
    "tpu.trace_stop"() : () -> ()
    %103 = vector.shape_cast %102 : vector<2x8x16xf32> to vector<16x16xf32>
    %104 = arith.truncf %103 : vector<16x16xf32> to vector<16x16xbf16>
    %105 = vector.extract_strided_slice %49 {offsets = [1, 0, 0], sizes = [1, 16, 32], strides = [1, 1, 1]} : vector<2x16x32xbf16> to vector<1x16x32xbf16>
    %106 = vector.shape_cast %105 : vector<1x16x32xbf16> to vector<16x32xbf16>
    %cst_40 = arith.constant dense<0.000000e+00> : vector<16x32xf32>
    %107 = tpu.matmul %104, %106, %cst_40 {dimension_numbers = #tpu.dot_dimension_numbers<[1], [0], [0], [1], [0, 0, 1, 1], [], []>} : vector<16x16xbf16>, vector<16x32xbf16>, vector<16x32xf32> -> vector<16x32xf32>
    %108 = arith.addf %79, %107 : vector<16x32xf32>
    %109 = arith.addf %1, %108 : vector<16x32xf32>
    %c0_41 = arith.constant 0 : index
    %c0_42 = arith.constant 0 : index
    %c0_43 = arith.constant 0 : index
    %110 = vector.load %arg9[%c0_41, %c0_42, %c0_43] : memref<2x1x32xf32, #tpu.memory_space<vmem>>, vector<1x1x32xf32>
    %111 = vector.shape_cast %110 : vector<1x1x32xf32> to vector<1x32xf32>
    %112 = vector.broadcast %111 : vector<1x32xf32> to vector<16x32xf32>
    %113 = arith.addf %109, %112 : vector<16x32xf32>
    %c0_44 = arith.constant 0 : index
    %c0_45 = arith.constant 0 : index
    %c0_46 = arith.constant 0 : index
    %114 = vector.load %arg10[%c0_44, %c0_45, %c0_46] : memref<2x1x32xf32, #tpu.memory_space<vmem>>, vector<1x1x32xf32>
    %115 = vector.shape_cast %114 : vector<1x1x32xf32> to vector<1x32xf32>
    %c0_47 = arith.constant 0 : index
    %c0_48 = arith.constant 0 : index
    %c0_49 = arith.constant 0 : index
    %116 = vector.load %arg11[%c0_47, %c0_48, %c0_49] : memref<2x1x32xf32, #tpu.memory_space<vmem>>, vector<1x1x32xf32>
    %117 = vector.shape_cast %116 : vector<1x1x32xf32> to vector<1x32xf32>
    %cst_50 = arith.constant dense<0.000000e+00> : vector<16xf32>
    %118 = vector.multi_reduction <add>, %113, %cst_50 [1] : vector<16x32xf32> to vector<16xf32>
    %119 = vector.shape_cast %118 : vector<16xf32> to vector<16x1xf32>
    %cst_51 = arith.constant 3.200000e+01 : f32
    %120 = vector.broadcast %cst_51 : f32 to vector<16x1xf32>
    %121 = arith.divf %119, %120 : vector<16x1xf32>
    %122 = vector.broadcast %121 : vector<16x1xf32> to vector<16x32xf32>
    %123 = arith.subf %113, %122 : vector<16x32xf32>
    %124 = arith.mulf %123, %123 : vector<16x32xf32>
    %cst_52 = arith.constant dense<0.000000e+00> : vector<16xf32>
    %125 = vector.multi_reduction <add>, %124, %cst_52 [1] : vector<16x32xf32> to vector<16xf32>
    %126 = vector.shape_cast %125 : vector<16xf32> to vector<16x1xf32>
    %cst_53 = arith.constant 3.200000e+01 : f32
    %127 = vector.broadcast %cst_53 : f32 to vector<16x1xf32>
    %128 = arith.divf %126, %127 : vector<16x1xf32>
    %129 = vector.broadcast %121 : vector<16x1xf32> to vector<16x32xf32>
    %130 = arith.subf %113, %129 : vector<16x32xf32>
    %cst_54 = arith.constant 9.99999974E-6 : f32
    %131 = vector.broadcast %cst_54 : f32 to vector<16x1xf32>
    %132 = arith.addf %128, %131 : vector<16x1xf32>
    %133 = math.rsqrt %132 : vector<16x1xf32>
    %134 = vector.broadcast %133 : vector<16x1xf32> to vector<16x32xf32>
    %135 = arith.mulf %130, %134 : vector<16x32xf32>
    %136 = vector.broadcast %115 : vector<1x32xf32> to vector<16x32xf32>
    %137 = arith.mulf %135, %136 : vector<16x32xf32>
    %138 = vector.broadcast %117 : vector<1x32xf32> to vector<16x32xf32>
    %139 = arith.addf %137, %138 : vector<16x32xf32>
    %140 = arith.truncf %139 : vector<16x32xf32> to vector<16x32xbf16>
    %c0_55 = arith.constant 0 : index
    %c0_56 = arith.constant 0 : index
    %c0_57 = arith.constant 0 : index
    %141 = vector.load %arg12[%c0_55, %c0_56, %c0_57] : memref<2x32x128xbf16, #tpu.memory_space<vmem>>, vector<1x32x128xbf16>
    %142 = vector.shape_cast %141 : vector<1x32x128xbf16> to vector<32x128xbf16>
    %cst_58 = arith.constant dense<0.000000e+00> : vector<16x128xf32>
    %143 = tpu.matmul %140, %142, %cst_58 {dimension_numbers = #tpu.dot_dimension_numbers<[1], [0], [0], [1], [0, 0, 1, 1], [], []>} : vector<16x32xbf16>, vector<32x128xbf16>, vector<16x128xf32> -> vector<16x128xf32>
    %c0_59 = arith.constant 0 : index
    %c0_60 = arith.constant 0 : index
    %c0_61 = arith.constant 0 : index
    %144 = vector.load %arg13[%c0_59, %c0_60, %c0_61] : memref<2x1x128xf32, #tpu.memory_space<vmem>>, vector<1x1x128xf32>
    %145 = vector.shape_cast %144 : vector<1x1x128xf32> to vector<1x128xf32>
    %146 = vector.broadcast %145 : vector<1x128xf32> to vector<16x128xf32>
    %147 = arith.addf %143, %146 : vector<16x128xf32>
    %cst_62 = arith.constant 5.000000e-01 : f32
    %148 = vector.broadcast %cst_62 : f32 to vector<16x128xf32>
    %149 = arith.mulf %148, %147 : vector<16x128xf32>
    %cst_63 = arith.constant 4.471500e-02 : f32
    %150 = vector.broadcast %cst_63 : f32 to vector<16x128xf32>
    %151 = arith.mulf %150, %147 : vector<16x128xf32>
    %152 = arith.mulf %151, %147 : vector<16x128xf32>
    %153 = arith.mulf %152, %147 : vector<16x128xf32>
    %154 = arith.addf %147, %153 : vector<16x128xf32>
    %cst_64 = arith.constant 0.797884583 : f32
    %155 = vector.broadcast %cst_64 : f32 to vector<16x128xf32>
    %156 = arith.mulf %155, %154 : vector<16x128xf32>
    %157 = math.tanh %156 : vector<16x128xf32>
    %cst_65 = arith.constant 1.000000e+00 : f32
    %158 = vector.broadcast %cst_65 : f32 to vector<16x128xf32>
    %159 = arith.addf %158, %157 : vector<16x128xf32>
    %160 = arith.mulf %149, %159 : vector<16x128xf32>
    %161 = arith.truncf %160 : vector<16x128xf32> to vector<16x128xbf16>
    %c0_66 = arith.constant 0 : index
    %c0_67 = arith.constant 0 : index
    %c0_68 = arith.constant 0 : index
    %162 = vector.load %arg14[%c0_66, %c0_67, %c0_68] : memref<2x128x32xbf16, #tpu.memory_space<vmem>>, vector<1x128x32xbf16>
    %163 = vector.shape_cast %162 : vector<1x128x32xbf16> to vector<128x32xbf16>
    %cst_69 = arith.constant dense<0.000000e+00> : vector<16x32xf32>
    %164 = tpu.matmul %161, %163, %cst_69 {dimension_numbers = #tpu.dot_dimension_numbers<[1], [0], [0], [1], [0, 0, 1, 1], [], []>} : vector<16x128xbf16>, vector<128x32xbf16>, vector<16x32xf32> -> vector<16x32xf32>
    %c0_70 = arith.constant 0 : index
    %c0_71 = arith.constant 0 : index
    %c0_72 = arith.constant 0 : index
    %165 = vector.load %arg15[%c0_70, %c0_71, %c0_72] : memref<2x1x32xf32, #tpu.memory_space<vmem>>, vector<1x1x32xf32>
    %166 = vector.shape_cast %165 : vector<1x1x32xf32> to vector<1x32xf32>
    %167 = vector.broadcast %166 : vector<1x32xf32> to vector<16x32xf32>
    %168 = arith.addf %164, %167 : vector<16x32xf32>
    %169 = arith.addf %113, %168 : vector<16x32xf32>
    %c1 = arith.constant 1 : index
    %c0_73 = arith.constant 0 : index
    %c0_74 = arith.constant 0 : index
    %170 = vector.load %arg4[%c1, %c0_73, %c0_74] : memref<2x1x32xf32, #tpu.memory_space<vmem>>, vector<1x1x32xf32>
    %171 = vector.shape_cast %170 : vector<1x1x32xf32> to vector<1x32xf32>
    %c1_75 = arith.constant 1 : index
    %c0_76 = arith.constant 0 : index
    %c0_77 = arith.constant 0 : index
    %172 = vector.load %arg5[%c1_75, %c0_76, %c0_77] : memref<2x1x32xf32, #tpu.memory_space<vmem>>, vector<1x1x32xf32>
    %173 = vector.shape_cast %172 : vector<1x1x32xf32> to vector<1x32xf32>
    %cst_78 = arith.constant dense<0.000000e+00> : vector<16xf32>
    %174 = vector.multi_reduction <add>, %169, %cst_78 [1] : vector<16x32xf32> to vector<16xf32>
    %175 = vector.shape_cast %174 : vector<16xf32> to vector<16x1xf32>
    %cst_79 = arith.constant 3.200000e+01 : f32
    %176 = vector.broadcast %cst_79 : f32 to vector<16x1xf32>
    %177 = arith.divf %175, %176 : vector<16x1xf32>
    %178 = vector.broadcast %177 : vector<16x1xf32> to vector<16x32xf32>
    %179 = arith.subf %169, %178 : vector<16x32xf32>
    %180 = arith.mulf %179, %179 : vector<16x32xf32>
    %cst_80 = arith.constant dense<0.000000e+00> : vector<16xf32>
    %181 = vector.multi_reduction <add>, %180, %cst_80 [1] : vector<16x32xf32> to vector<16xf32>
    %182 = vector.shape_cast %181 : vector<16xf32> to vector<16x1xf32>
    %cst_81 = arith.constant 3.200000e+01 : f32
    %183 = vector.broadcast %cst_81 : f32 to vector<16x1xf32>
    %184 = arith.divf %182, %183 : vector<16x1xf32>
    %185 = vector.broadcast %177 : vector<16x1xf32> to vector<16x32xf32>
    %186 = arith.subf %169, %185 : vector<16x32xf32>
    %cst_82 = arith.constant 9.99999974E-6 : f32
    %187 = vector.broadcast %cst_82 : f32 to vector<16x1xf32>
    %188 = arith.addf %184, %187 : vector<16x1xf32>
    %189 = math.rsqrt %188 : vector<16x1xf32>
    %190 = vector.broadcast %189 : vector<16x1xf32> to vector<16x32xf32>
    %191 = arith.mulf %186, %190 : vector<16x32xf32>
    %192 = vector.broadcast %171 : vector<1x32xf32> to vector<16x32xf32>
    %193 = arith.mulf %191, %192 : vector<16x32xf32>
    %194 = vector.broadcast %173 : vector<1x32xf32> to vector<16x32xf32>
    %195 = arith.addf %193, %194 : vector<16x32xf32>
    %196 = arith.truncf %195 : vector<16x32xf32> to vector<16x32xbf16>
    %c1_83 = arith.constant 1 : index
    %c0_84 = arith.constant 0 : index
    %c0_85 = arith.constant 0 : index
    %197 = vector.load %arg6[%c1_83, %c0_84, %c0_85] : memref<2x32x96xbf16, #tpu.memory_space<vmem>>, vector<1x32x96xbf16>
    %198 = vector.shape_cast %197 : vector<1x32x96xbf16> to vector<32x96xbf16>
    %cst_86 = arith.constant dense<0.000000e+00> : vector<16x96xf32>
    %199 = tpu.matmul %196, %198, %cst_86 {dimension_numbers = #tpu.dot_dimension_numbers<[1], [0], [0], [1], [0, 0, 1, 1], [], []>} : vector<16x32xbf16>, vector<32x96xbf16>, vector<16x96xf32> -> vector<16x96xf32>
    %c1_87 = arith.constant 1 : index
    %c0_88 = arith.constant 0 : index
    %c0_89 = arith.constant 0 : index
    %200 = vector.load %arg7[%c1_87, %c0_88, %c0_89] : memref<2x1x96xf32, #tpu.memory_space<vmem>>, vector<1x1x96xf32>
    %201 = vector.shape_cast %200 : vector<1x1x96xf32> to vector<1x96xf32>
    %202 = vector.broadcast %201 : vector<1x96xf32> to vector<16x96xf32>
    %203 = arith.addf %199, %202 : vector<16x96xf32>
    %204 = vector.shape_cast %203 : vector<16x96xf32> to vector<2x8x96xf32>
    %c1_90 = arith.constant 1 : index
    %c0_91 = arith.constant 0 : index
    %c0_92 = arith.constant 0 : index
    %c0_93 = arith.constant 0 : index
    %205 = vector.load %arg8[%c1_90, %c0_91, %c0_92, %c0_93] : memref<2x2x16x32xbf16, #tpu.memory_space<vmem>>, vector<1x2x16x32xbf16>
    %206 = vector.shape_cast %205 : vector<1x2x16x32xbf16> to vector<2x16x32xbf16>
    %cst_94 = arith.constant 0.000000e+00 : f32
    %207 = vector.broadcast %cst_94 : f32 to vector<16x32xf32>
    %208 = vector.extract_strided_slice %204 {offsets = [0, 0, 0], sizes = [2, 8, 16], strides = [1, 1, 1]} : vector<2x8x96xf32> to vector<2x8x16xf32>
    %209 = arith.truncf %208 : vector<2x8x16xf32> to vector<2x8x16xbf16>
    %210 = vector.extract_strided_slice %204 {offsets = [0, 0, 32], sizes = [2, 8, 16], strides = [1, 1, 1]} : vector<2x8x96xf32> to vector<2x8x16xf32>
    %211 = arith.truncf %210 : vector<2x8x16xf32> to vector<2x8x16xbf16>
    %212 = vector.extract_strided_slice %204 {offsets = [0, 0, 64], sizes = [2, 8, 16], strides = [1, 1, 1]} : vector<2x8x96xf32> to vector<2x8x16xf32>
    %213 = arith.truncf %212 : vector<2x8x16xf32> to vector<2x8x16xbf16>
    "tpu.trace_start"() <{level = 10 : i32, message = "bqd,bkd->bqk"}> : () -> ()
    %cst_95 = arith.constant dense<0.000000e+00> : vector<2x8x8xf32>
    %214 = tpu.matmul %209, %211, %cst_95 {dimension_numbers = #tpu.dot_dimension_numbers<[2], [2], [1], [1], [0, 0, 0, 1, 1, 1], [0], [0]>} : vector<2x8x16xbf16>, vector<2x8x16xbf16>, vector<2x8x8xf32> -> vector<2x8x8xf32>
    "tpu.trace_stop"() : () -> ()
    %cst_96 = arith.constant 2.500000e-01 : f32
    %215 = vector.broadcast %cst_96 : f32 to vector<2x8x8xf32>
    %216 = arith.mulf %214, %215 : vector<2x8x8xf32>
    %cst_97 = arith.constant -1.000000e+09 : f32
    %217 = vector.broadcast %cst_97 : f32 to vector<2x8x8xf32>
    %218 = arith.select %12, %216, %217 : vector<2x8x8xi1>, vector<2x8x8xf32>
    %cst_98 = arith.constant dense<0xFF800000> : vector<2x8xf32>
    %219 = vector.multi_reduction <maximumf>, %218, %cst_98 [2] : vector<2x8x8xf32> to vector<2x8xf32>
    %220 = vector.shape_cast %219 : vector<2x8xf32> to vector<2x8x1xf32>
    %221 = vector.broadcast %220 : vector<2x8x1xf32> to vector<2x8x8xf32>
    %222 = arith.subf %218, %221 : vector<2x8x8xf32>
    %223 = math.exp %222 : vector<2x8x8xf32>
    %cst_99 = arith.constant dense<0.000000e+00> : vector<2x8xf32>
    %224 = vector.multi_reduction <add>, %223, %cst_99 [2] : vector<2x8x8xf32> to vector<2x8xf32>
    %225 = vector.shape_cast %224 : vector<2x8xf32> to vector<2x8x1xf32>
    %226 = tpu.reciprocal %225 {approx = true} : vector<2x8x1xf32> -> vector<2x8x1xf32>
    %227 = vector.broadcast %226 : vector<2x8x1xf32> to vector<2x8x8xf32>
    %228 = arith.mulf %223, %227 : vector<2x8x8xf32>
    %229 = arith.truncf %228 : vector<2x8x8xf32> to vector<2x8x8xbf16>
    "tpu.trace_start"() <{level = 10 : i32, message = "bqk,bkd->bqd"}> : () -> ()
    %cst_100 = arith.constant dense<0.000000e+00> : vector<2x8x16xf32>
    %230 = tpu.matmul %229, %213, %cst_100 {dimension_numbers = #tpu.dot_dimension_numbers<[2], [1], [1], [2], [0, 0, 0, 1, 1, 2], [0], [0]>} : vector<2x8x8xbf16>, vector<2x8x16xbf16>, vector<2x8x16xf32> -> vector<2x8x16xf32>
    "tpu.trace_stop"() : () -> ()
    %231 = vector.shape_cast %230 : vector<2x8x16xf32> to vector<16x16xf32>
    %232 = arith.truncf %231 : vector<16x16xf32> to vector<16x16xbf16>
    %233 = vector.extract_strided_slice %206 {offsets = [0, 0, 0], sizes = [1, 16, 32], strides = [1, 1, 1]} : vector<2x16x32xbf16> to vector<1x16x32xbf16>
    %234 = vector.shape_cast %233 : vector<1x16x32xbf16> to vector<16x32xbf16>
    %cst_101 = arith.constant dense<0.000000e+00> : vector<16x32xf32>
    %235 = tpu.matmul %232, %234, %cst_101 {dimension_numbers = #tpu.dot_dimension_numbers<[1], [0], [0], [1], [0, 0, 1, 1], [], []>} : vector<16x16xbf16>, vector<16x32xbf16>, vector<16x32xf32> -> vector<16x32xf32>
    %236 = arith.addf %207, %235 : vector<16x32xf32>
    %237 = vector.extract_strided_slice %204 {offsets = [0, 0, 16], sizes = [2, 8, 16], strides = [1, 1, 1]} : vector<2x8x96xf32> to vector<2x8x16xf32>
    %238 = arith.truncf %237 : vector<2x8x16xf32> to vector<2x8x16xbf16>
    %239 = vector.extract_strided_slice %204 {offsets = [0, 0, 48], sizes = [2, 8, 16], strides = [1, 1, 1]} : vector<2x8x96xf32> to vector<2x8x16xf32>
    %240 = arith.truncf %239 : vector<2x8x16xf32> to vector<2x8x16xbf16>
    %241 = vector.extract_strided_slice %204 {offsets = [0, 0, 80], sizes = [2, 8, 16], strides = [1, 1, 1]} : vector<2x8x96xf32> to vector<2x8x16xf32>
    %242 = arith.truncf %241 : vector<2x8x16xf32> to vector<2x8x16xbf16>
    "tpu.trace_start"() <{level = 10 : i32, message = "bqd,bkd->bqk"}> : () -> ()
    %cst_102 = arith.constant dense<0.000000e+00> : vector<2x8x8xf32>
    %243 = tpu.matmul %238, %240, %cst_102 {dimension_numbers = #tpu.dot_dimension_numbers<[2], [2], [1], [1], [0, 0, 0, 1, 1, 1], [0], [0]>} : vector<2x8x16xbf16>, vector<2x8x16xbf16>, vector<2x8x8xf32> -> vector<2x8x8xf32>
    "tpu.trace_stop"() : () -> ()
    %cst_103 = arith.constant 2.500000e-01 : f32
    %244 = vector.broadcast %cst_103 : f32 to vector<2x8x8xf32>
    %245 = arith.mulf %243, %244 : vector<2x8x8xf32>
    %cst_104 = arith.constant -1.000000e+09 : f32
    %246 = vector.broadcast %cst_104 : f32 to vector<2x8x8xf32>
    %247 = arith.select %12, %245, %246 : vector<2x8x8xi1>, vector<2x8x8xf32>
    %cst_105 = arith.constant dense<0xFF800000> : vector<2x8xf32>
    %248 = vector.multi_reduction <maximumf>, %247, %cst_105 [2] : vector<2x8x8xf32> to vector<2x8xf32>
    %249 = vector.shape_cast %248 : vector<2x8xf32> to vector<2x8x1xf32>
    %250 = vector.broadcast %249 : vector<2x8x1xf32> to vector<2x8x8xf32>
    %251 = arith.subf %247, %250 : vector<2x8x8xf32>
    %252 = math.exp %251 : vector<2x8x8xf32>
    %cst_106 = arith.constant dense<0.000000e+00> : vector<2x8xf32>
    %253 = vector.multi_reduction <add>, %252, %cst_106 [2] : vector<2x8x8xf32> to vector<2x8xf32>
    %254 = vector.shape_cast %253 : vector<2x8xf32> to vector<2x8x1xf32>
    %255 = tpu.reciprocal %254 {approx = true} : vector<2x8x1xf32> -> vector<2x8x1xf32>
    %256 = vector.broadcast %255 : vector<2x8x1xf32> to vector<2x8x8xf32>
    %257 = arith.mulf %252, %256 : vector<2x8x8xf32>
    %258 = arith.truncf %257 : vector<2x8x8xf32> to vector<2x8x8xbf16>
    "tpu.trace_start"() <{level = 10 : i32, message = "bqk,bkd->bqd"}> : () -> ()
    %cst_107 = arith.constant dense<0.000000e+00> : vector<2x8x16xf32>
    %259 = tpu.matmul %258, %242, %cst_107 {dimension_numbers = #tpu.dot_dimension_numbers<[2], [1], [1], [2], [0, 0, 0, 1, 1, 2], [0], [0]>} : vector<2x8x8xbf16>, vector<2x8x16xbf16>, vector<2x8x16xf32> -> vector<2x8x16xf32>
    "tpu.trace_stop"() : () -> ()
    %260 = vector.shape_cast %259 : vector<2x8x16xf32> to vector<16x16xf32>
    %261 = arith.truncf %260 : vector<16x16xf32> to vector<16x16xbf16>
    %262 = vector.extract_strided_slice %206 {offsets = [1, 0, 0], sizes = [1, 16, 32], strides = [1, 1, 1]} : vector<2x16x32xbf16> to vector<1x16x32xbf16>
    %263 = vector.shape_cast %262 : vector<1x16x32xbf16> to vector<16x32xbf16>
    %cst_108 = arith.constant dense<0.000000e+00> : vector<16x32xf32>
    %264 = tpu.matmul %261, %263, %cst_108 {dimension_numbers = #tpu.dot_dimension_numbers<[1], [0], [0], [1], [0, 0, 1, 1], [], []>} : vector<16x16xbf16>, vector<16x32xbf16>, vector<16x32xf32> -> vector<16x32xf32>
    %265 = arith.addf %236, %264 : vector<16x32xf32>
    %266 = arith.addf %169, %265 : vector<16x32xf32>
    %c1_109 = arith.constant 1 : index
    %c0_110 = arith.constant 0 : index
    %c0_111 = arith.constant 0 : index
    %267 = vector.load %arg9[%c1_109, %c0_110, %c0_111] : memref<2x1x32xf32, #tpu.memory_space<vmem>>, vector<1x1x32xf32>
    %268 = vector.shape_cast %267 : vector<1x1x32xf32> to vector<1x32xf32>
    %269 = vector.broadcast %268 : vector<1x32xf32> to vector<16x32xf32>
    %270 = arith.addf %266, %269 : vector<16x32xf32>
    %c1_112 = arith.constant 1 : index
    %c0_113 = arith.constant 0 : index
    %c0_114 = arith.constant 0 : index
    %271 = vector.load %arg10[%c1_112, %c0_113, %c0_114] : memref<2x1x32xf32, #tpu.memory_space<vmem>>, vector<1x1x32xf32>
    %272 = vector.shape_cast %271 : vector<1x1x32xf32> to vector<1x32xf32>
    %c1_115 = arith.constant 1 : index
    %c0_116 = arith.constant 0 : index
    %c0_117 = arith.constant 0 : index
    %273 = vector.load %arg11[%c1_115, %c0_116, %c0_117] : memref<2x1x32xf32, #tpu.memory_space<vmem>>, vector<1x1x32xf32>
    %274 = vector.shape_cast %273 : vector<1x1x32xf32> to vector<1x32xf32>
    %cst_118 = arith.constant dense<0.000000e+00> : vector<16xf32>
    %275 = vector.multi_reduction <add>, %270, %cst_118 [1] : vector<16x32xf32> to vector<16xf32>
    %276 = vector.shape_cast %275 : vector<16xf32> to vector<16x1xf32>
    %cst_119 = arith.constant 3.200000e+01 : f32
    %277 = vector.broadcast %cst_119 : f32 to vector<16x1xf32>
    %278 = arith.divf %276, %277 : vector<16x1xf32>
    %279 = vector.broadcast %278 : vector<16x1xf32> to vector<16x32xf32>
    %280 = arith.subf %270, %279 : vector<16x32xf32>
    %281 = arith.mulf %280, %280 : vector<16x32xf32>
    %cst_120 = arith.constant dense<0.000000e+00> : vector<16xf32>
    %282 = vector.multi_reduction <add>, %281, %cst_120 [1] : vector<16x32xf32> to vector<16xf32>
    %283 = vector.shape_cast %282 : vector<16xf32> to vector<16x1xf32>
    %cst_121 = arith.constant 3.200000e+01 : f32
    %284 = vector.broadcast %cst_121 : f32 to vector<16x1xf32>
    %285 = arith.divf %283, %284 : vector<16x1xf32>
    %286 = vector.broadcast %278 : vector<16x1xf32> to vector<16x32xf32>
    %287 = arith.subf %270, %286 : vector<16x32xf32>
    %cst_122 = arith.constant 9.99999974E-6 : f32
    %288 = vector.broadcast %cst_122 : f32 to vector<16x1xf32>
    %289 = arith.addf %285, %288 : vector<16x1xf32>
    %290 = math.rsqrt %289 : vector<16x1xf32>
    %291 = vector.broadcast %290 : vector<16x1xf32> to vector<16x32xf32>
    %292 = arith.mulf %287, %291 : vector<16x32xf32>
    %293 = vector.broadcast %272 : vector<1x32xf32> to vector<16x32xf32>
    %294 = arith.mulf %292, %293 : vector<16x32xf32>
    %295 = vector.broadcast %274 : vector<1x32xf32> to vector<16x32xf32>
    %296 = arith.addf %294, %295 : vector<16x32xf32>
    %297 = arith.truncf %296 : vector<16x32xf32> to vector<16x32xbf16>
    %c1_123 = arith.constant 1 : index
    %c0_124 = arith.constant 0 : index
    %c0_125 = arith.constant 0 : index
    %298 = vector.load %arg12[%c1_123, %c0_124, %c0_125] : memref<2x32x128xbf16, #tpu.memory_space<vmem>>, vector<1x32x128xbf16>
    %299 = vector.shape_cast %298 : vector<1x32x128xbf16> to vector<32x128xbf16>
    %cst_126 = arith.constant dense<0.000000e+00> : vector<16x128xf32>
    %300 = tpu.matmul %297, %299, %cst_126 {dimension_numbers = #tpu.dot_dimension_numbers<[1], [0], [0], [1], [0, 0, 1, 1], [], []>} : vector<16x32xbf16>, vector<32x128xbf16>, vector<16x128xf32> -> vector<16x128xf32>
    %c1_127 = arith.constant 1 : index
    %c0_128 = arith.constant 0 : index
    %c0_129 = arith.constant 0 : index
    %301 = vector.load %arg13[%c1_127, %c0_128, %c0_129] : memref<2x1x128xf32, #tpu.memory_space<vmem>>, vector<1x1x128xf32>
    %302 = vector.shape_cast %301 : vector<1x1x128xf32> to vector<1x128xf32>
    %303 = vector.broadcast %302 : vector<1x128xf32> to vector<16x128xf32>
    %304 = arith.addf %300, %303 : vector<16x128xf32>
    %cst_130 = arith.constant 5.000000e-01 : f32
    %305 = vector.broadcast %cst_130 : f32 to vector<16x128xf32>
    %306 = arith.mulf %305, %304 : vector<16x128xf32>
    %cst_131 = arith.constant 4.471500e-02 : f32
    %307 = vector.broadcast %cst_131 : f32 to vector<16x128xf32>
    %308 = arith.mulf %307, %304 : vector<16x128xf32>
    %309 = arith.mulf %308, %304 : vector<16x128xf32>
    %310 = arith.mulf %309, %304 : vector<16x128xf32>
    %311 = arith.addf %304, %310 : vector<16x128xf32>
    %cst_132 = arith.constant 0.797884583 : f32
    %312 = vector.broadcast %cst_132 : f32 to vector<16x128xf32>
    %313 = arith.mulf %312, %311 : vector<16x128xf32>
    %314 = math.tanh %313 : vector<16x128xf32>
    %cst_133 = arith.constant 1.000000e+00 : f32
    %315 = vector.broadcast %cst_133 : f32 to vector<16x128xf32>
    %316 = arith.addf %315, %314 : vector<16x128xf32>
    %317 = arith.mulf %306, %316 : vector<16x128xf32>
    %318 = arith.truncf %317 : vector<16x128xf32> to vector<16x128xbf16>
    %c1_134 = arith.constant 1 : index
    %c0_135 = arith.constant 0 : index
    %c0_136 = arith.constant 0 : index
    %319 = vector.load %arg14[%c1_134, %c0_135, %c0_136] : memref<2x128x32xbf16, #tpu.memory_space<vmem>>, vector<1x128x32xbf16>
    %320 = vector.shape_cast %319 : vector<1x128x32xbf16> to vector<128x32xbf16>
    %cst_137 = arith.constant dense<0.000000e+00> : vector<16x32xf32>
    %321 = tpu.matmul %318, %320, %cst_137 {dimension_numbers = #tpu.dot_dimension_numbers<[1], [0], [0], [1], [0, 0, 1, 1], [], []>} : vector<16x128xbf16>, vector<128x32xbf16>, vector<16x32xf32> -> vector<16x32xf32>
    %c1_138 = arith.constant 1 : index
    %c0_139 = arith.constant 0 : index
    %c0_140 = arith.constant 0 : index
    %322 = vector.load %arg15[%c1_138, %c0_139, %c0_140] : memref<2x1x32xf32, #tpu.memory_space<vmem>>, vector<1x1x32xf32>
    %323 = vector.shape_cast %322 : vector<1x1x32xf32> to vector<1x32xf32>
    %324 = vector.broadcast %323 : vector<1x32xf32> to vector<16x32xf32>
    %325 = arith.addf %321, %324 : vector<16x32xf32>
    %326 = arith.addf %270, %325 : vector<16x32xf32>
    %c0_141 = arith.constant 0 : index
    %c0_142 = arith.constant 0 : index
    %327 = vector.load %arg20[%c0_141, %c0_142] : memref<16x32xf32, #tpu.memory_space<vmem>>, vector<16x32xf32>
    tpu.vector_store %arg20[%c0_141, %c0_142], %326 {strides = array<i32>} : memref<16x32xf32, #tpu.memory_space<vmem>>, vector<16x32xf32>,
    %cst_143 = arith.constant 0.000000e+00 : f32
    %328 = vector.broadcast %cst_143 : f32 to vector<8x32xf32>
    %c0_144 = arith.constant 0 : index
    %c0_145 = arith.constant 0 : index
    %329 = vector.load %arg21[%c0_144, %c0_145] : memref<8x32xf32, #tpu.memory_space<vmem>>, vector<8x32xf32>
    tpu.vector_store %arg21[%c0_144, %c0_145], %328 {strides = array<i32>} : memref<8x32xf32, #tpu.memory_space<vmem>>, vector<8x32xf32>,
    %c0_146 = arith.constant 0 : index
    %330 = memref.load %arg1[%c0_146] : memref<2xi32, #tpu.memory_space<smem>>
    %c0_i32 = arith.constant 0 : i32
    %331 = arith.addi %c0_i32, %330 : i32
    %332 = arith.index_cast %331 : i32 to index
    %c0_147 = arith.constant 0 : index
    %333 = vector.load %arg20[%332, %c0_147] : memref<16x32xf32, #tpu.memory_space<vmem>>, vector<1x32xf32>
    %c0_148 = arith.constant 0 : index
    %c0_149 = arith.constant 0 : index
    %334 = vector.load %arg21[%c0_148, %c0_149] : memref<8x32xf32, #tpu.memory_space<vmem>>, vector<1x32xf32>
    tpu.vector_store %arg21[%c0_148, %c0_149], %333 {strides = array<i32>} : memref<8x32xf32, #tpu.memory_space<vmem>>, vector<1x32xf32>,
    %c1_150 = arith.constant 1 : index
    %335 = memref.load %arg1[%c1_150] : memref<2xi32, #tpu.memory_space<smem>>
    %c8_i32 = arith.constant 8 : i32
    %336 = arith.addi %c8_i32, %335 : i32
    %337 = arith.index_cast %336 : i32 to index
    %c0_151 = arith.constant 0 : index
    %338 = vector.load %arg20[%337, %c0_151] : memref<16x32xf32, #tpu.memory_space<vmem>>, vector<1x32xf32>
    %c1_152 = arith.constant 1 : index
    %c0_153 = arith.constant 0 : index
    %339 = vector.load %arg21[%c1_152, %c0_153] : memref<8x32xf32, #tpu.memory_space<vmem>>, vector<1x32xf32>
    tpu.vector_store %arg21[%c1_152, %c0_153], %338 {strides = array<i32>} : memref<8x32xf32, #tpu.memory_space<vmem>>, vector<1x32xf32>,
    %c0_154 = arith.constant 0 : index
    %c0_155 = arith.constant 0 : index
    %340 = vector.load %arg21[%c0_154, %c0_155] : memref<8x32xf32, #tpu.memory_space<vmem>>, vector<8x32xf32>
    %c0_156 = arith.constant 0 : index
    %c0_157 = arith.constant 0 : index
    %341 = vector.load %arg16[%c0_156, %c0_157] : memref<1x32xf32, #tpu.memory_space<vmem>>, vector<1x32xf32>
    %c0_158 = arith.constant 0 : index
    %c0_159 = arith.constant 0 : index
    %342 = vector.load %arg17[%c0_158, %c0_159] : memref<1x32xf32, #tpu.memory_space<vmem>>, vector<1x32xf32>
    %cst_160 = arith.constant dense<0.000000e+00> : vector<8xf32>
    %343 = vector.multi_reduction <add>, %340, %cst_160 [1] : vector<8x32xf32> to vector<8xf32>
    %344 = vector.shape_cast %343 : vector<8xf32> to vector<8x1xf32>
    %cst_161 = arith.constant 3.200000e+01 : f32
    %345 = vector.broadcast %cst_161 : f32 to vector<8x1xf32>
    %346 = arith.divf %344, %345 : vector<8x1xf32>
    %347 = vector.broadcast %346 : vector<8x1xf32> to vector<8x32xf32>
    %348 = arith.subf %340, %347 : vector<8x32xf32>
    %349 = arith.mulf %348, %348 : vector<8x32xf32>
    %cst_162 = arith.constant dense<0.000000e+00> : vector<8xf32>
    %350 = vector.multi_reduction <add>, %349, %cst_162 [1] : vector<8x32xf32> to vector<8xf32>
    %351 = vector.shape_cast %350 : vector<8xf32> to vector<8x1xf32>
    %cst_163 = arith.constant 3.200000e+01 : f32
    %352 = vector.broadcast %cst_163 : f32 to vector<8x1xf32>
    %353 = arith.divf %351, %352 : vector<8x1xf32>
    %354 = vector.broadcast %346 : vector<8x1xf32> to vector<8x32xf32>
    %355 = arith.subf %340, %354 : vector<8x32xf32>
    %cst_164 = arith.constant 9.99999974E-6 : f32
    %356 = vector.broadcast %cst_164 : f32 to vector<8x1xf32>
    %357 = arith.addf %353, %356 : vector<8x1xf32>
    %358 = math.rsqrt %357 : vector<8x1xf32>
    %359 = vector.broadcast %358 : vector<8x1xf32> to vector<8x32xf32>
    %360 = arith.mulf %355, %359 : vector<8x32xf32>
    %361 = vector.broadcast %341 : vector<1x32xf32> to vector<8x32xf32>
    %362 = arith.mulf %360, %361 : vector<8x32xf32>
    %363 = vector.broadcast %342 : vector<1x32xf32> to vector<8x32xf32>
    %364 = arith.addf %362, %363 : vector<8x32xf32>
    %365 = arith.truncf %364 : vector<8x32xf32> to vector<8x32xbf16>
    %c0_165 = arith.constant 0 : index
    %c0_166 = arith.constant 0 : index
    %366 = vector.load %arg18[%c0_165, %c0_166] : memref<32x256xbf16, #tpu.memory_space<vmem>>, vector<32x256xbf16>
    %cst_167 = arith.constant dense<0.000000e+00> : vector<8x256xf32>
    %367 = tpu.matmul %365, %366, %cst_167 {dimension_numbers = #tpu.dot_dimension_numbers<[1], [0], [0], [1], [0, 0, 1, 1], [], []>} : vector<8x32xbf16>, vector<32x256xbf16>, vector<8x256xf32> -> vector<8x256xf32>
    %c0_168 = arith.constant 0 : index
    %c0_169 = arith.constant 0 : index
    %368 = vector.load %arg19[%c0_168, %c0_169] : memref<8x256xf32, #tpu.memory_space<vmem>>, vector<8x256xf32>
    tpu.vector_store %arg19[%c0_168, %c0_169], %367 {strides = array<i32>} : memref<8x256xf32, #tpu.memory_space<vmem>>, vector<8x256xf32>,
    return
  }
  func.func @transform_0(%arg0: i32) -> i32 {
    %c0_i32 = arith.constant 0 : i32
    %c0_i32_0 = arith.constant 0 : i32
    return %c0_i32 : i32
  }
  func.func @transform_1(%arg0: i32) -> (i32, i32, i32) {
    %c0_i32 = arith.constant 0 : i32
    %c0_i32_0 = arith.constant 0 : i32
    %c0_i32_1 = arith.constant 0 : i32
    %c0_i32_2 = arith.constant 0 : i32
    return %c0_i32, %c0_i32_0, %c0_i32_1 : i32, i32, i32
  }
  func.func @transform_2(%arg0: i32) -> (i32, i32) {
    %c0_i32 = arith.constant 0 : i32
    %c0_i32_0 = arith.constant 0 : i32
    %c0_i32_1 = arith.constant 0 : i32
    return %c0_i32, %c0_i32_0 : i32, i32
  }
  func.func @transform_3(%arg0: i32) -> (i32, i32, i32) {
    %c0_i32 = arith.constant 0 : i32
    %c0_i32_0 = arith.constant 0 : i32
    %c0_i32_1 = arith.constant 0 : i32
    %c0_i32_2 = arith.constant 0 : i32
    return %c0_i32, %c0_i32_0, %c0_i32_1 : i32, i32, i32
  }
  func.func @transform_4(%arg0: i32) -> (i32, i32, i32) {
    %c0_i32 = arith.constant 0 : i32
    %c0_i32_0 = arith.constant 0 : i32
    %c0_i32_1 = arith.constant 0 : i32
    %c0_i32_2 = arith.constant 0 : i32
    return %c0_i32, %c0_i32_0, %c0_i32_1 : i32, i32, i32
  }
  func.func @transform_5(%arg0: i32) -> (i32, i32, i32) {
    %c0_i32 = arith.constant 0 : i32
    %c0_i32_0 = arith.constant 0 : i32
    %c0_i32_1 = arith.constant 0 : i32
    %c0_i32_2 = arith.constant 0 : i32
    return %c0_i32, %c0_i32_0, %c0_i32_1 : i32, i32, i32
  }
  func.func @transform_6(%arg0: i32) -> (i32, i32, i32) {
    %c0_i32 = arith.constant 0 : i32
    %c0_i32_0 = arith.constant 0 : i32
    %c0_i32_1 = arith.constant 0 : i32
    %c0_i32_2 = arith.constant 0 : i32
    return %c0_i32, %c0_i32_0, %c0_i32_1 : i32, i32, i32
  }
  func.func @transform_7(%arg0: i32) -> (i32, i32, i32, i32) {
    %c0_i32 = arith.constant 0 : i32
    %c0_i32_0 = arith.constant 0 : i32
    %c0_i32_1 = arith.constant 0 : i32
    %c0_i32_2 = arith.constant 0 : i32
    %c0_i32_3 = arith.constant 0 : i32
    return %c0_i32, %c0_i32_0, %c0_i32_1, %c0_i32_2 : i32, i32, i32, i32
  }
  func.func @transform_8(%arg0: i32) -> (i32, i32, i32) {
    %c0_i32 = arith.constant 0 : i32
    %c0_i32_0 = arith.constant 0 : i32
    %c0_i32_1 = arith.constant 0 : i32
    %c0_i32_2 = arith.constant 0 : i32
    return %c0_i32, %c0_i32_0, %c0_i32_1 : i32, i32, i32
  }
  func.func @transform_9(%arg0: i32) -> (i32, i32, i32) {
    %c0_i32 = arith.constant 0 : i32
    %c0_i32_0 = arith.constant 0 : i32
    %c0_i32_1 = arith.constant 0 : i32
    %c0_i32_2 = arith.constant 0 : i32
    return %c0_i32, %c0_i32_0, %c0_i32_1 : i32, i32, i32
  }
  func.func @transform_10(%arg0: i32) -> (i32, i32, i32) {
    %c0_i32 = arith.constant 0 : i32
    %c0_i32_0 = arith.constant 0 : i32
    %c0_i32_1 = arith.constant 0 : i32
    %c0_i32_2 = arith.constant 0 : i32
    return %c0_i32, %c0_i32_0, %c0_i32_1 : i32, i32, i32
  }
  func.func @transform_11(%arg0: i32) -> (i32, i32, i32) {
    %c0_i32 = arith.constant 0 : i32
    %c0_i32_0 = arith.constant 0 : i32
    %c0_i32_1 = arith.constant 0 : i32
    %c0_i32_2 = arith.constant 0 : i32
    return %c0_i32, %c0_i32_0, %c0_i32_1 : i32, i32, i32
  }
  func.func @transform_12(%arg0: i32) -> (i32, i32, i32) {
    %c0_i32 = arith.constant 0 : i32
    %c0_i32_0 = arith.constant 0 : i32
    %c0_i32_1 = arith.constant 0 : i32
    %c0_i32_2 = arith.constant 0 : i32
    return %c0_i32, %c0_i32_0, %c0_i32_1 : i32, i32, i32
  }
  func.func @transform_13(%arg0: i32) -> (i32, i32, i32) {
    %c0_i32 = arith.constant 0 : i32
    %c0_i32_0 = arith.constant 0 : i32
    %c0_i32_1 = arith.constant 0 : i32
    %c0_i32_2 = arith.constant 0 : i32
    return %c0_i32, %c0_i32_0, %c0_i32_1 : i32, i32, i32
  }
  func.func @transform_14(%arg0: i32) -> (i32, i32, i32) {
    %c0_i32 = arith.constant 0 : i32
    %c0_i32_0 = arith.constant 0 : i32
    %c0_i32_1 = arith.constant 0 : i32
    %c0_i32_2 = arith.constant 0 : i32
    return %c0_i32, %c0_i32_0, %c0_i32_1 : i32, i32, i32
  }
  func.func @transform_15(%arg0: i32) -> (i32, i32) {
    %c0_i32 = arith.constant 0 : i32
    %c0_i32_0 = arith.constant 0 : i32
    %c0_i32_1 = arith.constant 0 : i32
    return %c0_i32, %c0_i32_0 : i32, i32
  }
  func.func @transform_16(%arg0: i32) -> (i32, i32) {
    %c0_i32 = arith.constant 0 : i32
    %c0_i32_0 = arith.constant 0 : i32
    %c0_i32_1 = arith.constant 0 : i32
    return %c0_i32, %c0_i32_0 : i32, i32
  }
  func.func @transform_17(%arg0: i32) -> (i32, i32) {
    %c0_i32 = arith.constant 0 : i32
    %c0_i32_0 = arith.constant 0 : i32
    %c0_i32_1 = arith.constant 0 : i32
    return %c0_i32, %c0_i32_0 : i32, i32
  }
  func.func @transform_18(%arg0: i32) -> (i32, i32) {
    %c0_i32 = arith.constant 0 : i32
    %c0_i32_0 = arith.constant 0 : i32
    %c0_i32_1 = arith.constant 0 : i32
    return %c0_i32, %c0_i32_0 : i32, i32
  }
}

</mosaic_0001>

<llo_original>
// kernel: sender_forward.1
$region0: #{sender_forward.1}
  #allocation0 [shape = 'u32[]', space=smem, size = 0x4, offset = 0x4, fixed_abs, tag = 'smem constant byte address 0x4 - core index']
  #allocation1 [shape = 'u32[144,128]{1,0:T(1,128)}', space=vmem, size = 0x12000, scoped, tag = 'internal scratch']
  #allocation2 [shape = 'f32[16,32]{1,0:T(8,128)}', space=vmem, size = 0x2000, scoped, tag = 'scratch operand']
  #allocation3 [shape = 'f32[8,32]{1,0:T(8,128)}', space=vmem, size = 0x1000, scoped, tag = 'scratch operand']
  %s0 = inlined_call_operand.vmem [shape: s32[2], index: 0, kind: input, shape index: {}]
  %s1 = inlined_call_operand.vmem [shape: f32[2,8,32], index: 1, kind: input, shape index: {}]
  %s2 = inlined_call_operand.vmem [shape: f32[2,8], index: 2, kind: input, shape index: {}]
  %s3 = inlined_call_operand.vmem [shape: f32[2,1,32], index: 3, kind: input, shape index: {}]
  %s4 = inlined_call_operand.vmem [shape: f32[2,1,32], index: 4, kind: input, shape index: {}]
  %s5 = inlined_call_operand.vmem [shape: bf16[2,32,96], index: 5, kind: input, shape index: {}]
  %s6 = inlined_call_operand.vmem [shape: f32[2,1,96], index: 6, kind: input, shape index: {}]
  %s7 = inlined_call_operand.vmem [shape: bf16[2,2,16,32], index: 7, kind: input, shape index: {}]
  %s8 = inlined_call_operand.vmem [shape: f32[2,1,32], index: 8, kind: input, shape index: {}]
  %s9 = inlined_call_operand.vmem [shape: f32[2,1,32], index: 9, kind: input, shape index: {}]
  %s10 = inlined_call_operand.vmem [shape: f32[2,1,32], index: 10, kind: input, shape index: {}]
  %s11 = inlined_call_operand.vmem [shape: bf16[2,32,128], index: 11, kind: input, shape index: {}]
  %s12 = inlined_call_operand.vmem [shape: f32[2,1,128], index: 12, kind: input, shape index: {}]
  %s13 = inlined_call_operand.vmem [shape: bf16[2,128,32], index: 13, kind: input, shape index: {}]
  %s14 = inlined_call_operand.vmem [shape: f32[2,1,32], index: 14, kind: input, shape index: {}]
  %s15 = inlined_call_operand.vmem [shape: f32[1,32], index: 15, kind: input, shape index: {}]
  %s16 = inlined_call_operand.vmem [shape: f32[1,32], index: 16, kind: input, shape index: {}]
  %s17 = inlined_call_operand.vmem [shape: bf16[32,256], index: 17, kind: input, shape index: {}]
  %s18 = inlined_call_operand.vmem [shape: f32[8,256], index: 18, kind: output, shape index: {}]
  %s19 = sld [smem:[#allocation0]]
  $region86: #{sender_forward.1} parent=0
    _
  %s21 = ssub.s32 1, %s19
  %s22 = scalar_select 0, %s21, %s19
  $region1: #{sender_forward.1} parent=0
    #allocation4 [shape = 'u8[512]{0}', space=smem, size = 0x200, scoped, tag = 'input window, operand 0, single buffered']
    #allocation5 [shape = 's32[1]{0}', space=sflag, size = 0x4, scoped, tag = 'scoped memory for sender_forward.1']
    %23 = vsyncpa [#allocation5], 0
    // Predicated region
    $region2: #{sender_forward.1} parent=1 // pred_check
      _
    $region3: #{sender_forward.1} parent=1 // pred_check_branch
      %25 = sbr.rel (0) target = $region5
    $region4: #{sender_forward.1} parent=1 // pred_region
      %s27 = ssub.s32 16, 16
      %28 = vsyncadd [#allocation5], %s27
      %s30 = sshll.u32 %s0, 4
      %s31 = int_to_ptr.vmem [resolvable:$true] %s30
      %33 = dma.vmem_to_smem %s31, 16, [#allocation4], [#allocation5]
    $region5: #{sender_forward.1} parent=1 // pred_fallthru
      _
    // Predicated region
    $region6: #{sender_forward.1} parent=1 // pred_check
      _
    $region7: #{sender_forward.1} parent=1 // pred_check_branch
      %35 = sbr.rel (0) target = $region9
    $region8: #{sender_forward.1} parent=1 // pred_region
      _
    $region9: #{sender_forward.1} parent=1 // pred_fallthru
      _
    // Predicated region
    $region10: #{sender_forward.1} parent=1 // pred_check
      _
    $region11: #{sender_forward.1} parent=1 // pred_check_branch
      %37 = sbr.rel (0) target = $region13
    $region12: #{sender_forward.1} parent=1 // pred_region
      _
    $region13: #{sender_forward.1} parent=1 // pred_fallthru
      _
    // Predicated region
    $region14: #{sender_forward.1} parent=1 // pred_check
      _
    $region15: #{sender_forward.1} parent=1 // pred_check_branch
      %39 = sbr.rel (0) target = $region17
    $region16: #{sender_forward.1} parent=1 // pred_region
      _
    $region17: #{sender_forward.1} parent=1 // pred_fallthru
      _
    // Predicated region
    $region18: #{sender_forward.1} parent=1 // pred_check
      _
    $region19: #{sender_forward.1} parent=1 // pred_check_branch
      %41 = sbr.rel (0) target = $region21
    $region20: #{sender_forward.1} parent=1 // pred_region
      _
    $region21: #{sender_forward.1} parent=1 // pred_fallthru
      _
    // Predicated region
    $region22: #{sender_forward.1} parent=1 // pred_check
      _
    $region23: #{sender_forward.1} parent=1 // pred_check_branch
      %43 = sbr.rel (0) target = $region25
    $region24: #{sender_forward.1} parent=1 // pred_region
      _
    $region25: #{sender_forward.1} parent=1 // pred_fallthru
      _
    // Predicated region
    $region26: #{sender_forward.1} parent=1 // pred_check
      _
    $region27: #{sender_forward.1} parent=1 // pred_check_branch
      %45 = sbr.rel (0) target = $region29
    $region28: #{sender_forward.1} parent=1 // pred_region
      _
    $region29: #{sender_forward.1} parent=1 // pred_fallthru
      _
    // Predicated region
    $region30: #{sender_forward.1} parent=1 // pred_check
      _
    $region31: #{sender_forward.1} parent=1 // pred_check_branch
      %47 = sbr.rel (0) target = $region33
    $region32: #{sender_forward.1} parent=1 // pred_region
      _
    $region33: #{sender_forward.1} parent=1 // pred_fallthru
      _
    // Predicated region
    $region34: #{sender_forward.1} parent=1 // pred_check
      _
    $region35: #{sender_forward.1} parent=1 // pred_check_branch
      %49 = sbr.rel (0) target = $region37
    $region36: #{sender_forward.1} parent=1 // pred_region
      _
    $region37: #{sender_forward.1} parent=1 // pred_fallthru
      _
    // Predicated region
    $region38: #{sender_forward.1} parent=1 // pred_check
      _
    $region39: #{sender_forward.1} parent=1 // pred_check_branch
      %51 = sbr.rel (0) target = $region41
    $region40: #{sender_forward.1} parent=1 // pred_region
      _
    $region41: #{sender_forward.1} parent=1 // pred_fallthru
      _
    // Predicated region
    $region42: #{sender_forward.1} parent=1 // pred_check
      _
    $region43: #{sender_forward.1} parent=1 // pred_check_branch
      %53 = sbr.rel (0) target = $region45
    $region44: #{sender_forward.1} parent=1 // pred_region
      _
    $region45: #{sender_forward.1} parent=1 // pred_fallthru
      _
    // Predicated region
    $region46: #{sender_forward.1} parent=1 // pred_check
      _
    $region47: #{sender_forward.1} parent=1 // pred_check_branch
      %55 = sbr.rel (0) target = $region49
    $region48: #{sender_forward.1} parent=1 // pred_region
      _
    $region49: #{sender_forward.1} parent=1 // pred_fallthru
      _
    // Predicated region
    $region50: #{sender_forward.1} parent=1 // pred_check
      _
    $region51: #{sender_forward.1} parent=1 // pred_check_branch
      %57 = sbr.rel (0) target = $region53
    $region52: #{sender_forward.1} parent=1 // pred_region
      _
    $region53: #{sender_forward.1} parent=1 // pred_fallthru
      _
    // Predicated region
    $region54: #{sender_forward.1} parent=1 // pred_check
      _
    $region55: #{sender_forward.1} parent=1 // pred_check_branch
      %59 = sbr.rel (0) target = $region57
    $region56: #{sender_forward.1} parent=1 // pred_region
      _
    $region57: #{sender_forward.1} parent=1 // pred_fallthru
      _
    // Predicated region
    $region58: #{sender_forward.1} parent=1 // pred_check
      _
    $region59: #{sender_forward.1} parent=1 // pred_check_branch
      %61 = sbr.rel (0) target = $region61
    $region60: #{sender_forward.1} parent=1 // pred_region
      _
    $region61: #{sender_forward.1} parent=1 // pred_fallthru
      _
    // Predicated region
    $region62: #{sender_forward.1} parent=1 // pred_check
      _
    $region63: #{sender_forward.1} parent=1 // pred_check_branch
      %63 = sbr.rel (0) target = $region65
    $region64: #{sender_forward.1} parent=1 // pred_region
      _
    $region65: #{sender_forward.1} parent=1 // pred_fallthru
      _
    // Predicated region
    $region66: #{sender_forward.1} parent=1 // pred_check
      _
    $region67: #{sender_forward.1} parent=1 // pred_check_branch
      %65 = sbr.rel (0) target = $region69
    $region68: #{sender_forward.1} parent=1 // pred_region
      _
    $region69: #{sender_forward.1} parent=1 // pred_fallthru
      _
    // Predicated region
    $region70: #{sender_forward.1} parent=1 // pred_check
      _
    $region71: #{sender_forward.1} parent=1 // pred_check_branch
      %67 = sbr.rel (0) target = $region73
    $region72: #{sender_forward.1} parent=1 // pred_region
      _
    $region73: #{sender_forward.1} parent=1 // pred_fallthru
      _
    // Predicated region
    $region74: #{sender_forward.1} parent=1 // pred_check
      _
    $region75: #{sender_forward.1} parent=1 // pred_check_branch
      %69 = sbr.rel (0) target = $region77
    $region76: #{sender_forward.1} parent=1 // pred_region
      %70 = dma.done [#allocation5], 16
    $region77: #{sender_forward.1} parent=1 // pred_fallthru
      _
    %71 = sfence
    %v73 = vld [vmem:[%s1] sm:$0xff]
    %v74 = vld [vmem:[%s1 + $0x8] sm:$0xff]
    %v75 = vlaneseq
    %v76 = vshrl.u32 %v75, 7
    %v77 = vlaneseq
    %v78 = vand.u32 %v77, 127
    %vm79 = vcmp.le.s32.totalorder %v78, %v76
    %v80 = vld [vmem:[%s2] sm:$0x3]
    %vm81 = vcmp.gt.f32.partialorder %v80, 0.5
    %v82 = vsel %vm81, 1, 0
    %v84 = vunpack.c.l.s4 1966171168
    %v85 = vunpack.c.0.s8 %v84
    %v86 = vlaneseq
    %v87 = vshrl.u32 %v86, 7
    %v88 = vsub.s32 %v85, %v87
    %v89 = vrot.slane %v82, %v88
    %v90 = vcombine.high %v89, %v89
    %v92 = vunpack.c.l.s4 1966171168
    %v93 = vunpack.c.0.s8 %v92
    %v94 = vlaneseq
    %v95 = vshrl.u32 %v94, 7
    %v96 = vsub.s32 %v93, %v95
    %v97 = vrot.slane %v89, %v96
    %v99 = vunpack.c.l.s4 1966171168
    %v100 = vunpack.c.0.s8 %v99
    %v101 = vlaneseq
    %v102 = vshrl.u32 %v101, 7
    %v103 = vsub.s32 %v100, %v102
    %v104 = vrot.slane %v90, %v103
    %vm105 = vcmp.ne.s32.totalorder %v97, 0
    %vm106 = vcmp.ne.s32.totalorder %v104, 0
    %v107 = vsel %vm79, 1, 0
    %vm108 = vcmp.eq.s32.totalorder %v107, 1
    %v109 = vsel %vm105, 1, 0
    %v110 = vsel %vm106, 1, 0
    %v111 = vlaneseq
    %v112 = vshrl.u32 %v111, 7
    %v113 = vsub.s32 0, %v112
    %v114 = vrot.slane %v109, %v113
    %v115 = vlaneseq
    %v116 = vshrl.u32 %v115, 7
    %v117 = vsub.s32 0, %v116
    %v118 = vrot.slane %v110, %v117
    %vm119 = vcmp.eq.s32.totalorder %v114, 1
    %vm120 = vcmp.eq.s32.totalorder %v118, 1
    %vm121 = vmand %vm108, %vm119
    %vm122 = vmand %vm108, %vm120
    %v123 = vld [vmem:[%s3] sm:$0x1]
    %v124 = vld [vmem:[%s4] sm:$0x1]
    %vm125 = vcmask 261120
    %v126 = vsel %vm125, %v73, 0.0
    %127 = vadd.xlane.f32.xlu0 %v126
    %v128 = vpop.xlane.xlu0 %127
    %v129 = vsel %vm125, %v74, 0.0
    %130 = vadd.xlane.f32.xlu0 %v129
    %v131 = vpop.xlane.xlu0 %130
    %v132 = vrcp.pop 32.0
    %v133 = vmul.f32 %v128, %v132
    %v134 = vmul.f32 %v131, %v132
    %v135 = vsub.f32 %v73, %v133
    %v136 = vsub.f32 %v74, %v134
    %v137 = vmul.f32 %v135, %v135
    %v138 = vmul.f32 %v136, %v136
    %v139 = vsel %vm125, %v137, 0.0
    %140 = vadd.xlane.f32.xlu0 %v139
    %v141 = vpop.xlane.xlu0 %140
    %v142 = vsel %vm125, %v138, 0.0
    %143 = vadd.xlane.f32.xlu0 %v142
    %v144 = vpop.xlane.xlu0 %143
    %v145 = vmul.f32 %v141, %v132
    %v146 = vmul.f32 %v144, %v132
    %v147 = vadd.f32 %v145, 1e-05
    %v148 = vadd.f32 %v146, 1e-05
    %v149 = vrsqrt.pop %v147
    %v150 = vrsqrt.pop %v148
    %v151 = vmul.f32 %v135, %v149
    %v152 = vmul.f32 %v136, %v150
    %v154 = vlaneseq
    %v155 = vshrl.u32 %v154, 7
    %v156 = vsub.s32 0, %v155
    %v157 = vrot.slane %v123, %v156
    %v159 = vmul.f32 %v151, %v157
    %v160 = vmul.f32 %v152, %v157
    %v162 = vlaneseq
    %v163 = vshrl.u32 %v162, 7
    %v164 = vsub.s32 0, %v163
    %v165 = vrot.slane %v124, %v164
    %v167 = vadd.f32 %v159, %v165
    %v168 = vadd.f32 %v160, %v165
    %v169 = vpack.c.bf16 %v168, %v167
    %v170 = vld [vmem:[%s5] sm:$0xf]
    %v171 = vld [vmem:[%s5 + $0x4] sm:$0xf]
    %v172 = vld [vmem:[%s5 + $0x8] sm:$0xf]
    %v173 = vld [vmem:[%s5 + $0xc] sm:$0xf]
    %v174 = vld [vmem:[%s6] sm:$0x1]
    %v176 = vlaneseq
    %v177 = vshrl.u32 %v176, 7
    %v178 = vsub.s32 0, %v177
    %v179 = vrot.slane %v174, %v178
    %v185 = vunpack.c.l.b16 %v170
    %v186 = vunpack.c.l.b16 %v171
    %v187 = vunpack.c.l.b16 %v172
    %v188 = vunpack.c.l.b16 %v173
    %v189 = vpack.c.b16 %v186, %v185
    %v190 = vpack.c.b16 %v188, %v187
    %v194 = vsel %vm125, %v169, 0
    %196 = vmatprep.subr.bf16.mxu0 0
    %197 = vmatpush1.bf16.msra.mxu0 0
    %198 = vmatprep.subr.bf16.mxu0 0
    %199 = vmatpush1.bf16.msra.mxu0 0
    %200 = vmatprep.subr.bf16.mxu0 0
    %201 = vmatpush1.bf16.msra.mxu0 0
    %202 = vmatprep.subr.bf16.mxu0 0
    %203 = vmatpush1.bf16.msra.mxu0 0
    %204 = vmatprep.subr.bf16.mxu0 0
    %205 = vmatpush1.bf16.msra.mxu0 0
    %206 = vmatprep.subr.bf16.mxu0 0
    %207 = vmatpush1.bf16.msra.mxu0 0
    %208 = vmatprep.subr.bf16.mxu0 0
    %209 = vmatpush1.bf16.msra.mxu0 %v190
    %210 = vmatprep.subr.bf16.mxu0 0
    %211 = vmatpush1.bf16.msra.mxu0 %v189
    %212 = vmatprep.subr.bf16.mxu0 0
    %213 = vmatpush2.bf16.msra.mxu0 0
    %214 = vmatprep.subr.bf16.mxu0 0
    %215 = vmatpush2.bf16.msra.mxu0 0
    %216 = vmatprep.subr.bf16.mxu0 0
    %217 = vmatpush2.bf16.msra.mxu0 0
    %218 = vmatprep.subr.bf16.mxu0 0
    %219 = vmatpush2.bf16.msra.mxu0 0
    %220 = vmatprep.subr.bf16.mxu0 0
    %221 = vmatpush2.bf16.msra.mxu0 0
    %222 = vmatprep.subr.bf16.mxu0 0
    %223 = vmatpush2.bf16.msra.mxu0 0
    %224 = vmatprep.subr.bf16.mxu0 0
    %225 = vmatpush2.bf16.msra.mxu0 0
    %226 = vmatprep.subr.bf16.mxu0 0
    %227 = vmatpush2.bf16.msra.mxu0 0
    %228 = vmatprep.mubr.bf16.mxu0 0
    %229 = vmatmul.mubr.bf16.gmra.mxu0 %v194
    %v230 = vpop.f32.mrf.mxu0
    %v231 = vadd.f32 %v179, %v230
    %v232 = vpop.f32.mrf.mxu0
    %v233 = vpop.f32.mrf.mxu0
    %v234 = vadd.f32 %v179, %v233
    %v235 = vpop.f32.mrf.mxu0
    %236 = vdwg.mxu0
    %v237 = vld [vmem:[%s7] sm:$0xf]
    %v238 = vld [vmem:[%s7 + $0x4] sm:$0xf]
    %v239 = vld [vmem:[%s7 + $0x8] sm:$0xf]
    %v240 = vld [vmem:[%s7 + $0xc] sm:$0xf]
    %v241 = vpack.c.bf16 %v231, %v231
    %v242 = vpack.c.bf16 %v234, %v234
    %244 = vrot.lane.b32.xlu0 %v241, 96
    %v245 = vpop.permute.xlu0 %244
    %vm246 = vcmask 130048
    %v248 = vsel %vm246, %v241, 0
    %v251 = vsel %vm246, %v245, 0
    %253 = vmatprep.subr.bf16.mxu0 0
    %254 = vmatpush1.bf16.xpose.msra.mxu0 0
    %255 = vmatprep.subr.bf16.mxu0 0
    %256 = vmatpush1.bf16.xpose.msra.mxu0 0
    %257 = vmatprep.subr.bf16.mxu0 0
    %258 = vmatpush1.bf16.xpose.msra.mxu0 0
    %259 = vmatprep.subr.bf16.mxu0 0
    %260 = vmatpush1.bf16.xpose.msra.mxu0 0
    %261 = vmatprep.subr.bf16.mxu0 0
    %262 = vmatpush1.bf16.xpose.msra.mxu0 0
    %263 = vmatprep.subr.bf16.mxu0 0
    %264 = vmatpush1.bf16.xpose.msra.mxu0 0
    %265 = vmatprep.subr.bf16.mxu0 0
    %266 = vmatpush1.bf16.xpose.msra.mxu0 0
    %267 = vmatprep.subr.bf16.mxu0 0
    %268 = vmatpush1.bf16.xpose.msra.mxu0 %v251
    %269 = vmatprep.subr.bf16.mxu0 0
    %270 = vmatpush2.bf16.xpose.msra.mxu0 0
    %271 = vmatprep.subr.bf16.mxu0 0
    %272 = vmatpush2.bf16.xpose.msra.mxu0 0
    %273 = vmatprep.subr.bf16.mxu0 0
    %274 = vmatpush2.bf16.xpose.msra.mxu0 0
    %275 = vmatprep.subr.bf16.mxu0 0
    %276 = vmatpush2.bf16.xpose.msra.mxu0 0
    %277 = vmatprep.subr.bf16.mxu0 0
    %278 = vmatpush2.bf16.xpose.msra.mxu0 0
    %279 = vmatprep.subr.bf16.mxu0 0
    %280 = vmatpush2.bf16.xpose.msra.mxu0 0
    %281 = vmatprep.subr.bf16.mxu0 0
    %282 = vmatpush2.bf16.xpose.msra.mxu0 0
    %283 = vmatprep.subr.bf16.mxu0 0
    %284 = vmatpush2.bf16.xpose.msra.mxu0 0
    %285 = vmatprep.mubr.bf16.mxu0 0
    %286 = vmatmul.mubr.bf16.gmra.mxu0 %v248
    %v287 = vpop.f32.mrf.mxu0
    %v288 = vadd.f32 0.0, %v287
    %v289 = vpop.f32.mrf.mxu0
    %v290 = vpop.f32.mrf.mxu0
    %v291 = vpop.f32.mrf.mxu0
    %292 = vdwg.mxu0
    %294 = vrot.lane.b32.xlu0 %v242, 96
    %v295 = vpop.permute.xlu0 %294
    %v297 = vsel %vm246, %v242, 0
    %v300 = vsel %vm246, %v295, 0
    %302 = vmatprep.subr.bf16.mxu0 0
    %303 = vmatpush1.bf16.xpose.msra.mxu0 0
    %304 = vmatprep.subr.bf16.mxu0 0
    %305 = vmatpush1.bf16.xpose.msra.mxu0 0
    %306 = vmatprep.subr.bf16.mxu0 0
    %307 = vmatpush1.bf16.xpose.msra.mxu0 0
    %308 = vmatprep.subr.bf16.mxu0 0
    %309 = vmatpush1.bf16.xpose.msra.mxu0 0
    %310 = vmatprep.subr.bf16.mxu0 0
    %311 = vmatpush1.bf16.xpose.msra.mxu0 0
    %312 = vmatprep.subr.bf16.mxu0 0
    %313 = vmatpush1.bf16.xpose.msra.mxu0 0
    %314 = vmatprep.subr.bf16.mxu0 0
    %315 = vmatpush1.bf16.xpose.msra.mxu0 0
    %316 = vmatprep.subr.bf16.mxu0 0
    %317 = vmatpush1.bf16.xpose.msra.mxu0 %v300
    %318 = vmatprep.subr.bf16.mxu0 0
    %319 = vmatpush2.bf16.xpose.msra.mxu0 0
    %320 = vmatprep.subr.bf16.mxu0 0
    %321 = vmatpush2.bf16.xpose.msra.mxu0 0
    %322 = vmatprep.subr.bf16.mxu0 0
    %323 = vmatpush2.bf16.xpose.msra.mxu0 0
    %324 = vmatprep.subr.bf16.mxu0 0
    %325 = vmatpush2.bf16.xpose.msra.mxu0 0
    %326 = vmatprep.subr.bf16.mxu0 0
    %327 = vmatpush2.bf16.xpose.msra.mxu0 0
    %328 = vmatprep.subr.bf16.mxu0 0
    %329 = vmatpush2.bf16.xpose.msra.mxu0 0
    %330 = vmatprep.subr.bf16.mxu0 0
    %331 = vmatpush2.bf16.xpose.msra.mxu0 0
    %332 = vmatprep.subr.bf16.mxu0 0
    %333 = vmatpush2.bf16.xpose.msra.mxu0 0
    %334 = vmatprep.mubr.bf16.mxu0 0
    %335 = vmatmul.mubr.bf16.gmra.mxu0 %v297
    %v336 = vpop.f32.mrf.mxu0
    %v337 = vadd.f32 0.0, %v336
    %v338 = vpop.f32.mrf.mxu0
    %v339 = vpop.f32.mrf.mxu0
    %v340 = vpop.f32.mrf.mxu0
    %341 = vdwg.mxu0
    %v342 = vmul.f32 %v288, 0.25
    %v343 = vmul.f32 %v337, 0.25
    %v344 = vsel %vm121, %v342, -1e+09
    %v345 = vsel %vm122, %v343, -1e+09
    %vm346 = vcmask 64512
    %v347 = vsel %vm346, %v344, -inf
    %348 = vmax.xlane.f32.xlu0 %v347
    %v349 = vpop.xlane.xlu0 %348
    %v350 = vsel %vm346, %v345, -inf
    %351 = vmax.xlane.f32.xlu0 %v350
    %v352 = vpop.xlane.xlu0 %351
    %v353 = vsub.f32 %v344, %v349
    %v354 = vsub.f32 %v345, %v352
    %v355 = vmul.f32 %v353, 1.442695
    %v356 = vpow.pop %v355
    %v357 = vmul.f32 %v354, 1.442695
    %v358 = vpow.pop %v357
    %v359 = vsel %vm346, %v356, 0.0
    %360 = vadd.xlane.f32.xlu0 %v359
    %v361 = vpop.xlane.xlu0 %360
    %v362 = vsel %vm346, %v358, 0.0
    %363 = vadd.xlane.f32.xlu0 %v362
    %v364 = vpop.xlane.xlu0 %363
    %v365 = vrcp.pop %v361
    %v366 = vrcp.pop %v364
    %v367 = vmul.f32 %v356, %v365
    %v368 = vmul.f32 %v358, %v366
    %v369 = vpack.c.bf16 %v367, %v367
    %v370 = vpack.c.bf16 %v368, %v368
    %371 = vrot.lane.b32.xlu0 %v241, 64
    %v372 = vpop.permute.xlu0 %371
    %v374 = vsel %vm346, %v369, 0
    %vm376 = vcmask 1043456
    %v378 = vsel %vm376, %v372, 0
    %380 = vmatprep.subr.bf16.mxu0 0
    %381 = vmatpush1.bf16.msra.mxu0 0
    %382 = vmatprep.subr.bf16.mxu0 0
    %383 = vmatpush1.bf16.msra.mxu0 0
    %384 = vmatprep.subr.bf16.mxu0 0
    %385 = vmatpush1.bf16.msra.mxu0 0
    %386 = vmatprep.subr.bf16.mxu0 0
    %387 = vmatpush1.bf16.msra.mxu0 0
    %388 = vmatprep.subr.bf16.mxu0 0
    %389 = vmatpush1.bf16.msra.mxu0 0
    %390 = vmatprep.subr.bf16.mxu0 0
    %391 = vmatpush1.bf16.msra.mxu0 0
    %392 = vmatprep.subr.bf16.mxu0 0
    %393 = vmatpush1.bf16.msra.mxu0 0
    %394 = vmatprep.subr.bf16.mxu0 0
    %395 = vmatpush1.bf16.msra.mxu0 %v378
    %396 = vmatprep.subr.bf16.mxu0 0
    %397 = vmatpush2.bf16.msra.mxu0 0
    %398 = vmatprep.subr.bf16.mxu0 0
    %399 = vmatpush2.bf16.msra.mxu0 0
    %400 = vmatprep.subr.bf16.mxu0 0
    %401 = vmatpush2.bf16.msra.mxu0 0
    %402 = vmatprep.subr.bf16.mxu0 0
    %403 = vmatpush2.bf16.msra.mxu0 0
    %404 = vmatprep.subr.bf16.mxu0 0
    %405 = vmatpush2.bf16.msra.mxu0 0
    %406 = vmatprep.subr.bf16.mxu0 0
    %407 = vmatpush2.bf16.msra.mxu0 0
    %408 = vmatprep.subr.bf16.mxu0 0
    %409 = vmatpush2.bf16.msra.mxu0 0
    %410 = vmatprep.subr.bf16.mxu0 0
    %411 = vmatpush2.bf16.msra.mxu0 0
    %412 = vmatprep.mubr.bf16.mxu0 0
    %413 = vmatmul.mubr.bf16.gmra.mxu0 %v374
    %v414 = vpop.f32.mrf.mxu0
    %v415 = vadd.f32 0.0, %v414
    %v416 = vpop.f32.mrf.mxu0
    %v417 = vpop.f32.mrf.mxu0
    %v418 = vpop.f32.mrf.mxu0
    %419 = vdwg.mxu0
    %420 = vrot.lane.b32.xlu0 %v242, 64
    %v421 = vpop.permute.xlu0 %420
    %v423 = vsel %vm346, %v370, 0
    %v426 = vsel %vm376, %v421, 0
    %428 = vmatprep.subr.bf16.mxu0 0
    %429 = vmatpush1.bf16.msra.mxu0 0
    %430 = vmatprep.subr.bf16.mxu0 0
    %431 = vmatpush1.bf16.msra.mxu0 0
    %432 = vmatprep.subr.bf16.mxu0 0
    %433 = vmatpush1.bf16.msra.mxu0 0
    %434 = vmatprep.subr.bf16.mxu0 0
    %435 = vmatpush1.bf16.msra.mxu0 0
    %436 = vmatprep.subr.bf16.mxu0 0
    %437 = vmatpush1.bf16.msra.mxu0 0
    %438 = vmatprep.subr.bf16.mxu0 0
    %439 = vmatpush1.bf16.msra.mxu0 0
    %440 = vmatprep.subr.bf16.mxu0 0
    %441 = vmatpush1.bf16.msra.mxu0 0
    %442 = vmatprep.subr.bf16.mxu0 0
    %443 = vmatpush1.bf16.msra.mxu0 %v426
    %444 = vmatprep.subr.bf16.mxu0 0
    %445 = vmatpush2.bf16.msra.mxu0 0
    %446 = vmatprep.subr.bf16.mxu0 0
    %447 = vmatpush2.bf16.msra.mxu0 0
    %448 = vmatprep.subr.bf16.mxu0 0
    %449 = vmatpush2.bf16.msra.mxu0 0
    %450 = vmatprep.subr.bf16.mxu0 0
    %451 = vmatpush2.bf16.msra.mxu0 0
    %452 = vmatprep.subr.bf16.mxu0 0
    %453 = vmatpush2.bf16.msra.mxu0 0
    %454 = vmatprep.subr.bf16.mxu0 0
    %455 = vmatpush2.bf16.msra.mxu0 0
    %456 = vmatprep.subr.bf16.mxu0 0
    %457 = vmatpush2.bf16.msra.mxu0 0
    %458 = vmatprep.subr.bf16.mxu0 0
    %459 = vmatpush2.bf16.msra.mxu0 0
    %460 = vmatprep.mubr.bf16.mxu0 0
    %461 = vmatmul.mubr.bf16.gmra.mxu0 %v423
    %v462 = vpop.f32.mrf.mxu0
    %v463 = vadd.f32 0.0, %v462
    %v464 = vpop.f32.mrf.mxu0
    %v465 = vpop.f32.mrf.mxu0
    %v466 = vpop.f32.mrf.mxu0
    %467 = vdwg.mxu0
    %v468 = vpack.c.bf16 %v463, %v415
    %469 = vrot.lane.b32.xlu0 %v241, 112
    %v470 = vpop.permute.xlu0 %469
    %471 = vrot.lane.b32.xlu0 %v241, 80
    %v472 = vpop.permute.xlu0 %471
    %v474 = vsel %vm246, %v470, 0
    %v477 = vsel %vm246, %v472, 0
    %479 = vmatprep.subr.bf16.mxu0 0
    %480 = vmatpush1.bf16.xpose.msra.mxu0 0
    %481 = vmatprep.subr.bf16.mxu0 0
    %482 = vmatpush1.bf16.xpose.msra.mxu0 0
    %483 = vmatprep.subr.bf16.mxu0 0
    %484 = vmatpush1.bf16.xpose.msra.mxu0 0
    %485 = vmatprep.subr.bf16.mxu0 0
    %486 = vmatpush1.bf16.xpose.msra.mxu0 0
    %487 = vmatprep.subr.bf16.mxu0 0
    %488 = vmatpush1.bf16.xpose.msra.mxu0 0
    %489 = vmatprep.subr.bf16.mxu0 0
    %490 = vmatpush1.bf16.xpose.msra.mxu0 0
    %491 = vmatprep.subr.bf16.mxu0 0
    %492 = vmatpush1.bf16.xpose.msra.mxu0 0
    %493 = vmatprep.subr.bf16.mxu0 0
    %494 = vmatpush1.bf16.xpose.msra.mxu0 %v477
    %495 = vmatprep.subr.bf16.mxu0 0
    %496 = vmatpush2.bf16.xpose.msra.mxu0 0
    %497 = vmatprep.subr.bf16.mxu0 0
    %498 = vmatpush2.bf16.xpose.msra.mxu0 0
    %499 = vmatprep.subr.bf16.mxu0 0
    %500 = vmatpush2.bf16.xpose.msra.mxu0 0
    %501 = vmatprep.subr.bf16.mxu0 0
    %502 = vmatpush2.bf16.xpose.msra.mxu0 0
    %503 = vmatprep.subr.bf16.mxu0 0
    %504 = vmatpush2.bf16.xpose.msra.mxu0 0
    %505 = vmatprep.subr.bf16.mxu0 0
    %506 = vmatpush2.bf16.xpose.msra.mxu0 0
    %507 = vmatprep.subr.bf16.mxu0 0
    %508 = vmatpush2.bf16.xpose.msra.mxu0 0
    %509 = vmatprep.subr.bf16.mxu0 0
    %510 = vmatpush2.bf16.xpose.msra.mxu0 0
    %511 = vmatprep.mubr.bf16.mxu0 0
    %512 = vmatmul.mubr.bf16.gmra.mxu0 %v474
    %v513 = vpop.f32.mrf.mxu0
    %v514 = vadd.f32 0.0, %v513
    %v515 = vpop.f32.mrf.mxu0
    %v516 = vpop.f32.mrf.mxu0
    %v517 = vpop.f32.mrf.mxu0
    %518 = vdwg.mxu0
    %519 = vrot.lane.b32.xlu0 %v242, 112
    %v520 = vpop.permute.xlu0 %519
    %521 = vrot.lane.b32.xlu0 %v242, 80
    %v522 = vpop.permute.xlu0 %521
    %v524 = vsel %vm246, %v520, 0
    %v527 = vsel %vm246, %v522, 0
    %529 = vmatprep.subr.bf16.mxu0 0
    %530 = vmatpush1.bf16.xpose.msra.mxu0 0
    %531 = vmatprep.subr.bf16.mxu0 0
    %532 = vmatpush1.bf16.xpose.msra.mxu0 0
    %533 = vmatprep.subr.bf16.mxu0 0
    %534 = vmatpush1.bf16.xpose.msra.mxu0 0
    %535 = vmatprep.subr.bf16.mxu0 0
    %536 = vmatpush1.bf16.xpose.msra.mxu0 0
    %537 = vmatprep.subr.bf16.mxu0 0
    %538 = vmatpush1.bf16.xpose.msra.mxu0 0
    %539 = vmatprep.subr.bf16.mxu0 0
    %540 = vmatpush1.bf16.xpose.msra.mxu0 0
    %541 = vmatprep.subr.bf16.mxu0 0
    %542 = vmatpush1.bf16.xpose.msra.mxu0 0
    %543 = vmatprep.subr.bf16.mxu0 0
    %544 = vmatpush1.bf16.xpose.msra.mxu0 %v527
    %545 = vmatprep.subr.bf16.mxu0 0
    %546 = vmatpush2.bf16.xpose.msra.mxu0 0
    %547 = vmatprep.subr.bf16.mxu0 0
    %548 = vmatpush2.bf16.xpose.msra.mxu0 0
    %549 = vmatprep.subr.bf16.mxu0 0
    %550 = vmatpush2.bf16.xpose.msra.mxu0 0
    %551 = vmatprep.subr.bf16.mxu0 0
    %552 = vmatpush2.bf16.xpose.msra.mxu0 0
    %553 = vmatprep.subr.bf16.mxu0 0
    %554 = vmatpush2.bf16.xpose.msra.mxu0 0
    %555 = vmatprep.subr.bf16.mxu0 0
    %556 = vmatpush2.bf16.xpose.msra.mxu0 0
    %557 = vmatprep.subr.bf16.mxu0 0
    %558 = vmatpush2.bf16.xpose.msra.mxu0 0
    %559 = vmatprep.subr.bf16.mxu0 0
    %560 = vmatpush2.bf16.xpose.msra.mxu0 0
    %561 = vmatprep.mubr.bf16.mxu0 0
    %562 = vmatmul.mubr.bf16.gmra.mxu0 %v524
    %v563 = vpop.f32.mrf.mxu0
    %v564 = vadd.f32 0.0, %v563
    %v565 = vpop.f32.mrf.mxu0
    %v566 = vpop.f32.mrf.mxu0
    %v567 = vpop.f32.mrf.mxu0
    %568 = vdwg.mxu0
    %v569 = vmul.f32 %v514, 0.25
    %v570 = vmul.f32 %v564, 0.25
    %v571 = vsel %vm121, %v569, -1e+09
    %v572 = vsel %vm122, %v570, -1e+09
    %v573 = vsel %vm346, %v571, -inf
    %574 = vmax.xlane.f32.xlu0 %v573
    %v575 = vpop.xlane.xlu0 %574
    %v576 = vsel %vm346, %v572, -inf
    %577 = vmax.xlane.f32.xlu0 %v576
    %v578 = vpop.xlane.xlu0 %577
    %v579 = vsub.f32 %v571, %v575
    %v580 = vsub.f32 %v572, %v578
    %v581 = vmul.f32 %v579, 1.442695
    %v582 = vpow.pop %v581
    %v583 = vmul.f32 %v580, 1.442695
    %v584 = vpow.pop %v583
    %v585 = vsel %vm346, %v582, 0.0
    %586 = vadd.xlane.f32.xlu0 %v585
    %v587 = vpop.xlane.xlu0 %586
    %v588 = vsel %vm346, %v584, 0.0
    %589 = vadd.xlane.f32.xlu0 %v588
    %v590 = vpop.xlane.xlu0 %589
    %v591 = vrcp.pop %v587
    %v592 = vrcp.pop %v590
    %v593 = vmul.f32 %v582, %v591
    %v594 = vmul.f32 %v584, %v592
    %v595 = vpack.c.bf16 %v593, %v593
    %v596 = vpack.c.bf16 %v594, %v594
    %597 = vrot.lane.b32.xlu0 %v241, 48
    %v598 = vpop.permute.xlu0 %597
    %v600 = vsel %vm346, %v595, 0
    %v603 = vsel %vm376, %v598, 0
    %605 = vmatprep.subr.bf16.mxu0 0
    %606 = vmatpush1.bf16.msra.mxu0 0
    %607 = vmatprep.subr.bf16.mxu0 0
    %608 = vmatpush1.bf16.msra.mxu0 0
    %609 = vmatprep.subr.bf16.mxu0 0
    %610 = vmatpush1.bf16.msra.mxu0 0
    %611 = vmatprep.subr.bf16.mxu0 0
    %612 = vmatpush1.bf16.msra.mxu0 0
    %613 = vmatprep.subr.bf16.mxu0 0
    %614 = vmatpush1.bf16.msra.mxu0 0
    %615 = vmatprep.subr.bf16.mxu0 0
    %616 = vmatpush1.bf16.msra.mxu0 0
    %617 = vmatprep.subr.bf16.mxu0 0
    %618 = vmatpush1.bf16.msra.mxu0 0
    %619 = vmatprep.subr.bf16.mxu0 0
    %620 = vmatpush1.bf16.msra.mxu0 %v603
    %621 = vmatprep.subr.bf16.mxu0 0
    %622 = vmatpush2.bf16.msra.mxu0 0
    %623 = vmatprep.subr.bf16.mxu0 0
    %624 = vmatpush2.bf16.msra.mxu0 0
    %625 = vmatprep.subr.bf16.mxu0 0
    %626 = vmatpush2.bf16.msra.mxu0 0
    %627 = vmatprep.subr.bf16.mxu0 0
    %628 = vmatpush2.bf16.msra.mxu0 0
    %629 = vmatprep.subr.bf16.mxu0 0
    %630 = vmatpush2.bf16.msra.mxu0 0
    %631 = vmatprep.subr.bf16.mxu0 0
    %632 = vmatpush2.bf16.msra.mxu0 0
    %633 = vmatprep.subr.bf16.mxu0 0
    %634 = vmatpush2.bf16.msra.mxu0 0
    %635 = vmatprep.subr.bf16.mxu0 0
    %636 = vmatpush2.bf16.msra.mxu0 0
    %637 = vmatprep.mubr.bf16.mxu0 0
    %638 = vmatmul.mubr.bf16.gmra.mxu0 %v600
    %v639 = vpop.f32.mrf.mxu0
    %v640 = vadd.f32 0.0, %v639
    %v641 = vpop.f32.mrf.mxu0
    %v642 = vpop.f32.mrf.mxu0
    %v643 = vpop.f32.mrf.mxu0
    %644 = vdwg.mxu0
    %645 = vrot.lane.b32.xlu0 %v242, 48
    %v646 = vpop.permute.xlu0 %645
    %v648 = vsel %vm346, %v596, 0
    %v651 = vsel %vm376, %v646, 0
    %653 = vmatprep.subr.bf16.mxu0 0
    %654 = vmatpush1.bf16.msra.mxu0 0
    %655 = vmatprep.subr.bf16.mxu0 0
    %656 = vmatpush1.bf16.msra.mxu0 0
    %657 = vmatprep.subr.bf16.mxu0 0
    %658 = vmatpush1.bf16.msra.mxu0 0
    %659 = vmatprep.subr.bf16.mxu0 0
    %660 = vmatpush1.bf16.msra.mxu0 0
    %661 = vmatprep.subr.bf16.mxu0 0
    %662 = vmatpush1.bf16.msra.mxu0 0
    %663 = vmatprep.subr.bf16.mxu0 0
    %664 = vmatpush1.bf16.msra.mxu0 0
    %665 = vmatprep.subr.bf16.mxu0 0
    %666 = vmatpush1.bf16.msra.mxu0 0
    %667 = vmatprep.subr.bf16.mxu0 0
    %668 = vmatpush1.bf16.msra.mxu0 %v651
    %669 = vmatprep.subr.bf16.mxu0 0
    %670 = vmatpush2.bf16.msra.mxu0 0
    %671 = vmatprep.subr.bf16.mxu0 0
    %672 = vmatpush2.bf16.msra.mxu0 0
    %673 = vmatprep.subr.bf16.mxu0 0
    %674 = vmatpush2.bf16.msra.mxu0 0
    %675 = vmatprep.subr.bf16.mxu0 0
    %676 = vmatpush2.bf16.msra.mxu0 0
    %677 = vmatprep.subr.bf16.mxu0 0
    %678 = vmatpush2.bf16.msra.mxu0 0
    %679 = vmatprep.subr.bf16.mxu0 0
    %680 = vmatpush2.bf16.msra.mxu0 0
    %681 = vmatprep.subr.bf16.mxu0 0
    %682 = vmatpush2.bf16.msra.mxu0 0
    %683 = vmatprep.subr.bf16.mxu0 0
    %684 = vmatpush2.bf16.msra.mxu0 0
    %685 = vmatprep.mubr.bf16.mxu0 0
    %686 = vmatmul.mubr.bf16.gmra.mxu0 %v648
    %v687 = vpop.f32.mrf.mxu0
    %v688 = vadd.f32 0.0, %v687
    %v689 = vpop.f32.mrf.mxu0
    %v690 = vpop.f32.mrf.mxu0
    %v691 = vpop.f32.mrf.mxu0
    %692 = vdwg.mxu0
    %v693 = vpack.c.bf16 %v688, %v640
    %v696 = vunpack.c.l.b16 %v239
    %v697 = vunpack.c.l.b16 %v240
    %v698 = vpack.c.b16 %v697, %v696
    %v701 = vsel %vm246, %v693, 0
    %703 = vmatprep.subr.bf16.mxu0 0
    %704 = vmatpush1.bf16.msra.mxu0 0
    %705 = vmatprep.subr.bf16.mxu0 0
    %706 = vmatpush1.bf16.msra.mxu0 0
    %707 = vmatprep.subr.bf16.mxu0 0
    %708 = vmatpush1.bf16.msra.mxu0 0
    %709 = vmatprep.subr.bf16.mxu0 0
    %710 = vmatpush1.bf16.msra.mxu0 0
    %711 = vmatprep.subr.bf16.mxu0 0
    %712 = vmatpush1.bf16.msra.mxu0 0
    %713 = vmatprep.subr.bf16.mxu0 0
    %714 = vmatpush1.bf16.msra.mxu0 0
    %715 = vmatprep.subr.bf16.mxu0 0
    %716 = vmatpush1.bf16.msra.mxu0 0
    %717 = vmatprep.subr.bf16.mxu0 0
    %718 = vmatpush1.bf16.msra.mxu0 %v698
    %719 = vmatprep.subr.bf16.mxu0 0
    %720 = vmatpush2.bf16.msra.mxu0 0
    %721 = vmatprep.subr.bf16.mxu0 0
    %722 = vmatpush2.bf16.msra.mxu0 0
    %723 = vmatprep.subr.bf16.mxu0 0
    %724 = vmatpush2.bf16.msra.mxu0 0
    %725 = vmatprep.subr.bf16.mxu0 0
    %726 = vmatpush2.bf16.msra.mxu0 0
    %727 = vmatprep.subr.bf16.mxu0 0
    %728 = vmatpush2.bf16.msra.mxu0 0
    %729 = vmatprep.subr.bf16.mxu0 0
    %730 = vmatpush2.bf16.msra.mxu0 0
    %731 = vmatprep.subr.bf16.mxu0 0
    %732 = vmatpush2.bf16.msra.mxu0 0
    %733 = vmatprep.subr.bf16.mxu0 0
    %734 = vmatpush2.bf16.msra.mxu0 0
    %735 = vmatprep.mubr.bf16.mxu0 0
    %736 = vmatmul.mubr.bf16.gmra.mxu0 %v701
    %v737 = vpop.f32.mrf.mxu0
    %v738 = vadd.f32 0.0, %v737
    %v739 = vpop.f32.mrf.mxu0
    %v740 = vpop.f32.mrf.mxu0
    %v741 = vadd.f32 0.0, %v740
    %v742 = vpop.f32.mrf.mxu0
    %743 = vdwg.mxu0
    %v746 = vunpack.c.l.b16 %v237
    %v747 = vunpack.c.l.b16 %v238
    %v748 = vpack.c.b16 %v747, %v746
    %v751 = vsel %vm246, %v468, 0
    %753 = vmatprep.subr.bf16.mxu0 0
    %754 = vmatpush1.bf16.msra.mxu0 0
    %755 = vmatprep.subr.bf16.mxu0 0
    %756 = vmatpush1.bf16.msra.mxu0 0
    %757 = vmatprep.subr.bf16.mxu0 0
    %758 = vmatpush1.bf16.msra.mxu0 0
    %759 = vmatprep.subr.bf16.mxu0 0
    %760 = vmatpush1.bf16.msra.mxu0 0
    %761 = vmatprep.subr.bf16.mxu0 0
    %762 = vmatpush1.bf16.msra.mxu0 0
    %763 = vmatprep.subr.bf16.mxu0 0
    %764 = vmatpush1.bf16.msra.mxu0 0
    %765 = vmatprep.subr.bf16.mxu0 0
    %766 = vmatpush1.bf16.msra.mxu0 0
    %767 = vmatprep.subr.bf16.mxu0 0
    %768 = vmatpush1.bf16.msra.mxu0 %v748
    %769 = vmatprep.subr.bf16.mxu0 0
    %770 = vmatpush2.bf16.msra.mxu0 0
    %771 = vmatprep.subr.bf16.mxu0 0
    %772 = vmatpush2.bf16.msra.mxu0 0
    %773 = vmatprep.subr.bf16.mxu0 0
    %774 = vmatpush2.bf16.msra.mxu0 0
    %775 = vmatprep.subr.bf16.mxu0 0
    %776 = vmatpush2.bf16.msra.mxu0 0
    %777 = vmatprep.subr.bf16.mxu0 0
    %778 = vmatpush2.bf16.msra.mxu0 0
    %779 = vmatprep.subr.bf16.mxu0 0
    %780 = vmatpush2.bf16.msra.mxu0 0
    %781 = vmatprep.subr.bf16.mxu0 0
    %782 = vmatpush2.bf16.msra.mxu0 0
    %783 = vmatprep.subr.bf16.mxu0 0
    %784 = vmatpush2.bf16.msra.mxu0 0
    %785 = vmatprep.mubr.bf16.mxu0 0
    %786 = vmatmul.mubr.bf16.gmra.mxu0 %v751
    %v787 = vpop.f32.mrf.mxu0
    %v788 = vadd.f32 %v738, %v787
    %v789 = vpop.f32.mrf.mxu0
    %v790 = vpop.f32.mrf.mxu0
    %v791 = vadd.f32 %v741, %v790
    %v792 = vpop.f32.mrf.mxu0
    %793 = vdwg.mxu0
    %v794 = vadd.f32 %v73, %v788
    %v795 = vadd.f32 %v74, %v791
    %v796 = vld [vmem:[%s8] sm:$0x1]
    %v798 = vlaneseq
    %v799 = vshrl.u32 %v798, 7
    %v800 = vsub.s32 0, %v799
    %v801 = vrot.slane %v796, %v800
    %v803 = vadd.f32 %v794, %v801
    %v804 = vadd.f32 %v795, %v801
    %v805 = vld [vmem:[%s9] sm:$0x1]
    %v806 = vld [vmem:[%s10] sm:$0x1]
    %v807 = vsel %vm125, %v803, 0.0
    %808 = vadd.xlane.f32.xlu0 %v807
    %v809 = vpop.xlane.xlu0 %808
    %v810 = vsel %vm125, %v804, 0.0
    %811 = vadd.xlane.f32.xlu0 %v810
    %v812 = vpop.xlane.xlu0 %811
    %v813 = vmul.f32 %v809, %v132
    %v814 = vmul.f32 %v812, %v132
    %v815 = vsub.f32 %v803, %v813
    %v816 = vsub.f32 %v804, %v814
    %v817 = vmul.f32 %v815, %v815
    %v818 = vmul.f32 %v816, %v816
    %v819 = vsel %vm125, %v817, 0.0
    %820 = vadd.xlane.f32.xlu0 %v819
    %v821 = vpop.xlane.xlu0 %820
    %v822 = vsel %vm125, %v818, 0.0
    %823 = vadd.xlane.f32.xlu0 %v822
    %v824 = vpop.xlane.xlu0 %823
    %v825 = vmul.f32 %v821, %v132
    %v826 = vmul.f32 %v824, %v132
    %v827 = vadd.f32 %v825, 1e-05
    %v828 = vadd.f32 %v826, 1e-05
    %v829 = vrsqrt.pop %v827
    %v830 = vrsqrt.pop %v828
    %v831 = vmul.f32 %v815, %v829
    %v832 = vmul.f32 %v816, %v830
    %v834 = vlaneseq
    %v835 = vshrl.u32 %v834, 7
    %v836 = vsub.s32 0, %v835
    %v837 = vrot.slane %v805, %v836
    %v839 = vmul.f32 %v831, %v837
    %v840 = vmul.f32 %v832, %v837
    %v842 = vlaneseq
    %v843 = vshrl.u32 %v842, 7
    %v844 = vsub.s32 0, %v843
    %v845 = vrot.slane %v806, %v844
    %v847 = vadd.f32 %v839, %v845
    %v848 = vadd.f32 %v840, %v845
    %v849 = vpack.c.bf16 %v848, %v847
    %v850 = vld [vmem:[%s11] sm:$0xf]
    %v851 = vld [vmem:[%s11 + $0x4] sm:$0xf]
    %v852 = vld [vmem:[%s11 + $0x8] sm:$0xf]
    %v853 = vld [vmem:[%s11 + $0xc] sm:$0xf]
    %v854 = vld [vmem:[%s12] sm:$0x1]
    %v856 = vlaneseq
    %v857 = vshrl.u32 %v856, 7
    %v858 = vsub.s32 0, %v857
    %v859 = vrot.slane %v854, %v858
    %v865 = vunpack.c.l.b16 %v850
    %v866 = vunpack.c.l.b16 %v851
    %v867 = vunpack.c.l.b16 %v852
    %v868 = vunpack.c.l.b16 %v853
    %v869 = vpack.c.b16 %v866, %v865
    %v870 = vpack.c.b16 %v868, %v867
    %v874 = vsel %vm125, %v849, 0
    %876 = vmatprep.subr.bf16.mxu0 0
    %877 = vmatpush1.bf16.msra.mxu0 0
    %878 = vmatprep.subr.bf16.mxu0 0
    %879 = vmatpush1.bf16.msra.mxu0 0
    %880 = vmatprep.subr.bf16.mxu0 0
    %881 = vmatpush1.bf16.msra.mxu0 0
    %882 = vmatprep.subr.bf16.mxu0 0
    %883 = vmatpush1.bf16.msra.mxu0 0
    %884 = vmatprep.subr.bf16.mxu0 0
    %885 = vmatpush1.bf16.msra.mxu0 0
    %886 = vmatprep.subr.bf16.mxu0 0
    %887 = vmatpush1.bf16.msra.mxu0 0
    %888 = vmatprep.subr.bf16.mxu0 0
    %889 = vmatpush1.bf16.msra.mxu0 %v870
    %890 = vmatprep.subr.bf16.mxu0 0
    %891 = vmatpush1.bf16.msra.mxu0 %v869
    %892 = vmatprep.subr.bf16.mxu0 0
    %893 = vmatpush2.bf16.msra.mxu0 0
    %894 = vmatprep.subr.bf16.mxu0 0
    %895 = vmatpush2.bf16.msra.mxu0 0
    %896 = vmatprep.subr.bf16.mxu0 0
    %897 = vmatpush2.bf16.msra.mxu0 0
    %898 = vmatprep.subr.bf16.mxu0 0
    %899 = vmatpush2.bf16.msra.mxu0 0
    %900 = vmatprep.subr.bf16.mxu0 0
    %901 = vmatpush2.bf16.msra.mxu0 0
    %902 = vmatprep.subr.bf16.mxu0 0
    %903 = vmatpush2.bf16.msra.mxu0 0
    %904 = vmatprep.subr.bf16.mxu0 0
    %905 = vmatpush2.bf16.msra.mxu0 0
    %906 = vmatprep.subr.bf16.mxu0 0
    %907 = vmatpush2.bf16.msra.mxu0 0
    %908 = vmatprep.mubr.bf16.mxu0 0
    %909 = vmatmul.mubr.bf16.gmra.mxu0 %v874
    %v910 = vpop.f32.mrf.mxu0
    %v911 = vadd.f32 %v859, %v910
    %v912 = vpop.f32.mrf.mxu0
    %v913 = vpop.f32.mrf.mxu0
    %v914 = vadd.f32 %v859, %v913
    %v915 = vpop.f32.mrf.mxu0
    %916 = vdwg.mxu0
    %v917 = vmul.f32 %v911, 0.5
    %v918 = vmul.f32 %v914, 0.5
    %v919 = vmul.f32 %v911, 0.044715
    %v920 = vmul.f32 %v914, 0.044715
    %v921 = vmul.f32 %v919, %v911
    %v922 = vmul.f32 %v920, %v914
    %v923 = vmul.f32 %v921, %v911
    %v924 = vmul.f32 %v922, %v914
    %v925 = vadd.f32 %v911, %v923
    %v926 = vadd.f32 %v914, %v924
    %v927 = vmul.f32 %v925, 0.7978846
    %v928 = vmul.f32 %v926, 0.7978846
    %v929 = vtanh.pop %v927
    %v930 = vtanh.pop %v928
    %v931 = vadd.f32 %v929, 1.0
    %v932 = vadd.f32 %v930, 1.0
    %v933 = vmul.f32 %v917, %v931
    %v934 = vmul.f32 %v918, %v932
    %v935 = vpack.c.bf16 %v934, %v933
    %v936 = vld [vmem:[%s13] sm:$0xf]
    %v937 = vld [vmem:[%s13 + $0x4] sm:$0xf]
    %v938 = vld [vmem:[%s13 + $0x8] sm:$0xf]
    %v939 = vld [vmem:[%s13 + $0xc] sm:$0xf]
    %v940 = vld [vmem:[%s13 + $0x10] sm:$0xf]
    %v941 = vld [vmem:[%s13 + $0x14] sm:$0xf]
    %v942 = vld [vmem:[%s13 + $0x18] sm:$0xf]
    %v943 = vld [vmem:[%s13 + $0x1c] sm:$0xf]
    %v944 = vld [vmem:[%s13 + $0x20] sm:$0xf]
    %v945 = vld [vmem:[%s13 + $0x24] sm:$0xf]
    %v946 = vld [vmem:[%s13 + $0x28] sm:$0xf]
    %v947 = vld [vmem:[%s13 + $0x2c] sm:$0xf]
    %v948 = vld [vmem:[%s13 + $0x30] sm:$0xf]
    %v949 = vld [vmem:[%s13 + $0x34] sm:$0xf]
    %v950 = vld [vmem:[%s13 + $0x38] sm:$0xf]
    %v951 = vld [vmem:[%s13 + $0x3c] sm:$0xf]
    %v952 = vld [vmem:[%s14] sm:$0x1]
    %v954 = vlaneseq
    %v955 = vshrl.u32 %v954, 7
    %v956 = vsub.s32 0, %v955
    %v957 = vrot.slane %v952, %v956
    %v975 = vunpack.c.l.b16 %v936
    %v976 = vunpack.c.l.b16 %v937
    %v977 = vunpack.c.l.b16 %v938
    %v978 = vunpack.c.l.b16 %v939
    %v979 = vunpack.c.l.b16 %v940
    %v980 = vunpack.c.l.b16 %v941
    %v981 = vunpack.c.l.b16 %v942
    %v982 = vunpack.c.l.b16 %v943
    %v983 = vunpack.c.l.b16 %v944
    %v984 = vunpack.c.l.b16 %v945
    %v985 = vunpack.c.l.b16 %v946
    %v986 = vunpack.c.l.b16 %v947
    %v987 = vunpack.c.l.b16 %v948
    %v988 = vunpack.c.l.b16 %v949
    %v989 = vunpack.c.l.b16 %v950
    %v990 = vunpack.c.l.b16 %v951
    %v991 = vpack.c.b16 %v976, %v975
    %v992 = vpack.c.b16 %v978, %v977
    %v993 = vpack.c.b16 %v980, %v979
    %v994 = vpack.c.b16 %v982, %v981
    %v995 = vpack.c.b16 %v984, %v983
    %v996 = vpack.c.b16 %v986, %v985
    %v997 = vpack.c.b16 %v988, %v987
    %v998 = vpack.c.b16 %v990, %v989
    %1007 = vmatprep.subr.bf16.mxu0 0
    %1008 = vmatpush1.bf16.msra.mxu0 %v998
    %1009 = vmatprep.subr.bf16.mxu0 0
    %1010 = vmatpush1.bf16.msra.mxu0 %v997
    %1011 = vmatprep.subr.bf16.mxu0 0
    %1012 = vmatpush1.bf16.msra.mxu0 %v996
    %1013 = vmatprep.subr.bf16.mxu0 0
    %1014 = vmatpush1.bf16.msra.mxu0 %v995
    %1015 = vmatprep.subr.bf16.mxu0 0
    %1016 = vmatpush1.bf16.msra.mxu0 %v994
    %1017 = vmatprep.subr.bf16.mxu0 0
    %1018 = vmatpush1.bf16.msra.mxu0 %v993
    %1019 = vmatprep.subr.bf16.mxu0 0
    %1020 = vmatpush1.bf16.msra.mxu0 %v992
    %1021 = vmatprep.subr.bf16.mxu0 0
    %1022 = vmatpush1.bf16.msra.mxu0 %v991
    %1023 = vmatprep.subr.bf16.mxu0 0
    %1024 = vmatpush2.bf16.msra.mxu0 0
    %1025 = vmatprep.subr.bf16.mxu0 0
    %1026 = vmatpush2.bf16.msra.mxu0 0
    %1027 = vmatprep.subr.bf16.mxu0 0
    %1028 = vmatpush2.bf16.msra.mxu0 0
    %1029 = vmatprep.subr.bf16.mxu0 0
    %1030 = vmatpush2.bf16.msra.mxu0 0
    %1031 = vmatprep.subr.bf16.mxu0 0
    %1032 = vmatpush2.bf16.msra.mxu0 0
    %1033 = vmatprep.subr.bf16.mxu0 0
    %1034 = vmatpush2.bf16.msra.mxu0 0
    %1035 = vmatprep.subr.bf16.mxu0 0
    %1036 = vmatpush2.bf16.msra.mxu0 0
    %1037 = vmatprep.subr.bf16.mxu0 0
    %1038 = vmatpush2.bf16.msra.mxu0 0
    %1039 = vmatprep.mubr.bf16.mxu0 0
    %1040 = vmatmul.mubr.bf16.gmra.mxu0 %v935
    %v1041 = vpop.f32.mrf.mxu0
    %v1042 = vadd.f32 %v957, %v1041
    %v1043 = vpop.f32.mrf.mxu0
    %v1044 = vpop.f32.mrf.mxu0
    %v1045 = vadd.f32 %v957, %v1044
    %v1046 = vpop.f32.mrf.mxu0
    %1047 = vdwg.mxu0
    %v1048 = vadd.f32 %v803, %v1042
    %v1049 = vadd.f32 %v804, %v1045
    %s1050 = scalar_lea.vmem %s3, 1
    %v1051 = vld [vmem:[%s1050] sm:$0x1]
    %s1052 = scalar_lea.vmem %s4, 1
    %v1053 = vld [vmem:[%s1052] sm:$0x1]
    %v1054 = vsel %vm125, %v1048, 0.0
    %1055 = vadd.xlane.f32.xlu0 %v1054
    %v1056 = vpop.xlane.xlu0 %1055
    %v1057 = vsel %vm125, %v1049, 0.0
    %1058 = vadd.xlane.f32.xlu0 %v1057
    %v1059 = vpop.xlane.xlu0 %1058
    %v1060 = vmul.f32 %v1056, %v132
    %v1061 = vmul.f32 %v1059, %v132
    %v1062 = vsub.f32 %v1048, %v1060
    %v1063 = vsub.f32 %v1049, %v1061
    %v1064 = vmul.f32 %v1062, %v1062
    %v1065 = vmul.f32 %v1063, %v1063
    %v1066 = vsel %vm125, %v1064, 0.0
    %1067 = vadd.xlane.f32.xlu0 %v1066
    %v1068 = vpop.xlane.xlu0 %1067
    %v1069 = vsel %vm125, %v1065, 0.0
    %1070 = vadd.xlane.f32.xlu0 %v1069
    %v1071 = vpop.xlane.xlu0 %1070
    %v1072 = vmul.f32 %v1068, %v132
    %v1073 = vmul.f32 %v1071, %v132
    %v1074 = vadd.f32 %v1072, 1e-05
    %v1075 = vadd.f32 %v1073, 1e-05
    %v1076 = vrsqrt.pop %v1074
    %v1077 = vrsqrt.pop %v1075
    %v1078 = vmul.f32 %v1062, %v1076
    %v1079 = vmul.f32 %v1063, %v1077
    %v1081 = vlaneseq
    %v1082 = vshrl.u32 %v1081, 7
    %v1083 = vsub.s32 0, %v1082
    %v1084 = vrot.slane %v1051, %v1083
    %v1086 = vmul.f32 %v1078, %v1084
    %v1087 = vmul.f32 %v1079, %v1084
    %v1089 = vlaneseq
    %v1090 = vshrl.u32 %v1089, 7
    %v1091 = vsub.s32 0, %v1090
    %v1092 = vrot.slane %v1053, %v1091
    %v1094 = vadd.f32 %v1086, %v1092
    %v1095 = vadd.f32 %v1087, %v1092
    %v1096 = vpack.c.bf16 %v1095, %v1094
    %s1097 = scalar_lea.vmem %s5, 16
    %v1098 = vld [vmem:[%s1097] sm:$0xf]
    %v1099 = vld [vmem:[%s1097 + $0x4] sm:$0xf]
    %v1100 = vld [vmem:[%s1097 + $0x8] sm:$0xf]
    %v1101 = vld [vmem:[%s1097 + $0xc] sm:$0xf]
    %s1102 = scalar_lea.vmem %s6, 1
    %v1103 = vld [vmem:[%s1102] sm:$0x1]
    %v1105 = vlaneseq
    %v1106 = vshrl.u32 %v1105, 7
    %v1107 = vsub.s32 0, %v1106
    %v1108 = vrot.slane %v1103, %v1107
    %v1114 = vunpack.c.l.b16 %v1098
    %v1115 = vunpack.c.l.b16 %v1099
    %v1116 = vunpack.c.l.b16 %v1100
    %v1117 = vunpack.c.l.b16 %v1101
    %v1118 = vpack.c.b16 %v1115, %v1114
    %v1119 = vpack.c.b16 %v1117, %v1116
    %v1123 = vsel %vm125, %v1096, 0
    %1125 = vmatprep.subr.bf16.mxu0 0
    %1126 = vmatpush1.bf16.msra.mxu0 0
    %1127 = vmatprep.subr.bf16.mxu0 0
    %1128 = vmatpush1.bf16.msra.mxu0 0
    %1129 = vmatprep.subr.bf16.mxu0 0
    %1130 = vmatpush1.bf16.msra.mxu0 0
    %1131 = vmatprep.subr.bf16.mxu0 0
    %1132 = vmatpush1.bf16.msra.mxu0 0
    %1133 = vmatprep.subr.bf16.mxu0 0
    %1134 = vmatpush1.bf16.msra.mxu0 0
    %1135 = vmatprep.subr.bf16.mxu0 0
    %1136 = vmatpush1.bf16.msra.mxu0 0
    %1137 = vmatprep.subr.bf16.mxu0 0
    %1138 = vmatpush1.bf16.msra.mxu0 %v1119
    %1139 = vmatprep.subr.bf16.mxu0 0
    %1140 = vmatpush1.bf16.msra.mxu0 %v1118
    %1141 = vmatprep.subr.bf16.mxu0 0
    %1142 = vmatpush2.bf16.msra.mxu0 0
    %1143 = vmatprep.subr.bf16.mxu0 0
    %1144 = vmatpush2.bf16.msra.mxu0 0
    %1145 = vmatprep.subr.bf16.mxu0 0
    %1146 = vmatpush2.bf16.msra.mxu0 0
    %1147 = vmatprep.subr.bf16.mxu0 0
    %1148 = vmatpush2.bf16.msra.mxu0 0
    %1149 = vmatprep.subr.bf16.mxu0 0
    %1150 = vmatpush2.bf16.msra.mxu0 0
    %1151 = vmatprep.subr.bf16.mxu0 0
    %1152 = vmatpush2.bf16.msra.mxu0 0
    %1153 = vmatprep.subr.bf16.mxu0 0
    %1154 = vmatpush2.bf16.msra.mxu0 0
    %1155 = vmatprep.subr.bf16.mxu0 0
    %1156 = vmatpush2.bf16.msra.mxu0 0
    %1157 = vmatprep.mubr.bf16.mxu0 0
    %1158 = vmatmul.mubr.bf16.gmra.mxu0 %v1123
    %v1159 = vpop.f32.mrf.mxu0
    %v1160 = vadd.f32 %v1108, %v1159
    %v1161 = vpop.f32.mrf.mxu0
    %v1162 = vpop.f32.mrf.mxu0
    %v1163 = vadd.f32 %v1108, %v1162
    %v1164 = vpop.f32.mrf.mxu0
    %1165 = vdwg.mxu0
    %s1166 = scalar_lea.vmem %s7, 16
    %v1167 = vld [vmem:[%s1166] sm:$0xf]
    %v1168 = vld [vmem:[%s1166 + $0x4] sm:$0xf]
    %v1169 = vld [vmem:[%s1166 + $0x8] sm:$0xf]
    %v1170 = vld [vmem:[%s1166 + $0xc] sm:$0xf]
    %v1171 = vpack.c.bf16 %v1160, %v1160
    %v1172 = vpack.c.bf16 %v1163, %v1163
    %1174 = vrot.lane.b32.xlu0 %v1171, 96
    %v1175 = vpop.permute.xlu0 %1174
    %v1177 = vsel %vm246, %v1171, 0
    %v1180 = vsel %vm246, %v1175, 0
    %1182 = vmatprep.subr.bf16.mxu0 0
    %1183 = vmatpush1.bf16.xpose.msra.mxu0 0
    %1184 = vmatprep.subr.bf16.mxu0 0
    %1185 = vmatpush1.bf16.xpose.msra.mxu0 0
    %1186 = vmatprep.subr.bf16.mxu0 0
    %1187 = vmatpush1.bf16.xpose.msra.mxu0 0
    %1188 = vmatprep.subr.bf16.mxu0 0
    %1189 = vmatpush1.bf16.xpose.msra.mxu0 0
    %1190 = vmatprep.subr.bf16.mxu0 0
    %1191 = vmatpush1.bf16.xpose.msra.mxu0 0
    %1192 = vmatprep.subr.bf16.mxu0 0
    %1193 = vmatpush1.bf16.xpose.msra.mxu0 0
    %1194 = vmatprep.subr.bf16.mxu0 0
    %1195 = vmatpush1.bf16.xpose.msra.mxu0 0
    %1196 = vmatprep.subr.bf16.mxu0 0
    %1197 = vmatpush1.bf16.xpose.msra.mxu0 %v1180
    %1198 = vmatprep.subr.bf16.mxu0 0
    %1199 = vmatpush2.bf16.xpose.msra.mxu0 0
    %1200 = vmatprep.subr.bf16.mxu0 0
    %1201 = vmatpush2.bf16.xpose.msra.mxu0 0
    %1202 = vmatprep.subr.bf16.mxu0 0
    %1203 = vmatpush2.bf16.xpose.msra.mxu0 0
    %1204 = vmatprep.subr.bf16.mxu0 0
    %1205 = vmatpush2.bf16.xpose.msra.mxu0 0
    %1206 = vmatprep.subr.bf16.mxu0 0
    %1207 = vmatpush2.bf16.xpose.msra.mxu0 0
    %1208 = vmatprep.subr.bf16.mxu0 0
    %1209 = vmatpush2.bf16.xpose.msra.mxu0 0
    %1210 = vmatprep.subr.bf16.mxu0 0
    %1211 = vmatpush2.bf16.xpose.msra.mxu0 0
    %1212 = vmatprep.subr.bf16.mxu0 0
    %1213 = vmatpush2.bf16.xpose.msra.mxu0 0
    %1214 = vmatprep.mubr.bf16.mxu0 0
    %1215 = vmatmul.mubr.bf16.gmra.mxu0 %v1177
    %v1216 = vpop.f32.mrf.mxu0
    %v1217 = vadd.f32 0.0, %v1216
    %v1218 = vpop.f32.mrf.mxu0
    %v1219 = vpop.f32.mrf.mxu0
    %v1220 = vpop.f32.mrf.mxu0
    %1221 = vdwg.mxu0
    %1223 = vrot.lane.b32.xlu0 %v1172, 96
    %v1224 = vpop.permute.xlu0 %1223
    %v1226 = vsel %vm246, %v1172, 0
    %v1229 = vsel %vm246, %v1224, 0
    %1231 = vmatprep.subr.bf16.mxu0 0
    %1232 = vmatpush1.bf16.xpose.msra.mxu0 0
    %1233 = vmatprep.subr.bf16.mxu0 0
    %1234 = vmatpush1.bf16.xpose.msra.mxu0 0
    %1235 = vmatprep.subr.bf16.mxu0 0
    %1236 = vmatpush1.bf16.xpose.msra.mxu0 0
    %1237 = vmatprep.subr.bf16.mxu0 0
    %1238 = vmatpush1.bf16.xpose.msra.mxu0 0
    %1239 = vmatprep.subr.bf16.mxu0 0
    %1240 = vmatpush1.bf16.xpose.msra.mxu0 0
    %1241 = vmatprep.subr.bf16.mxu0 0
    %1242 = vmatpush1.bf16.xpose.msra.mxu0 0
    %1243 = vmatprep.subr.bf16.mxu0 0
    %1244 = vmatpush1.bf16.xpose.msra.mxu0 0
    %1245 = vmatprep.subr.bf16.mxu0 0
    %1246 = vmatpush1.bf16.xpose.msra.mxu0 %v1229
    %1247 = vmatprep.subr.bf16.mxu0 0
    %1248 = vmatpush2.bf16.xpose.msra.mxu0 0
    %1249 = vmatprep.subr.bf16.mxu0 0
    %1250 = vmatpush2.bf16.xpose.msra.mxu0 0
    %1251 = vmatprep.subr.bf16.mxu0 0
    %1252 = vmatpush2.bf16.xpose.msra.mxu0 0
    %1253 = vmatprep.subr.bf16.mxu0 0
    %1254 = vmatpush2.bf16.xpose.msra.mxu0 0
    %1255 = vmatprep.subr.bf16.mxu0 0
    %1256 = vmatpush2.bf16.xpose.msra.mxu0 0
    %1257 = vmatprep.subr.bf16.mxu0 0
    %1258 = vmatpush2.bf16.xpose.msra.mxu0 0
    %1259 = vmatprep.subr.bf16.mxu0 0
    %1260 = vmatpush2.bf16.xpose.msra.mxu0 0
    %1261 = vmatprep.subr.bf16.mxu0 0
    %1262 = vmatpush2.bf16.xpose.msra.mxu0 0
    %1263 = vmatprep.mubr.bf16.mxu0 0
    %1264 = vmatmul.mubr.bf16.gmra.mxu0 %v1226
    %v1265 = vpop.f32.mrf.mxu0
    %v1266 = vadd.f32 0.0, %v1265
    %v1267 = vpop.f32.mrf.mxu0
    %v1268 = vpop.f32.mrf.mxu0
    %v1269 = vpop.f32.mrf.mxu0
    %1270 = vdwg.mxu0
    %v1271 = vmul.f32 %v1217, 0.25
    %v1272 = vmul.f32 %v1266, 0.25
    %v1273 = vsel %vm121, %v1271, -1e+09
    %v1274 = vsel %vm122, %v1272, -1e+09
    %v1275 = vsel %vm346, %v1273, -inf
    %1276 = vmax.xlane.f32.xlu0 %v1275
    %v1277 = vpop.xlane.xlu0 %1276
    %v1278 = vsel %vm346, %v1274, -inf
    %1279 = vmax.xlane.f32.xlu0 %v1278
    %v1280 = vpop.xlane.xlu0 %1279
    %v1281 = vsub.f32 %v1273, %v1277
    %v1282 = vsub.f32 %v1274, %v1280
    %v1283 = vmul.f32 %v1281, 1.442695
    %v1284 = vpow.pop %v1283
    %v1285 = vmul.f32 %v1282, 1.442695
    %v1286 = vpow.pop %v1285
    %v1287 = vsel %vm346, %v1284, 0.0
    %1288 = vadd.xlane.f32.xlu0 %v1287
    %v1289 = vpop.xlane.xlu0 %1288
    %v1290 = vsel %vm346, %v1286, 0.0
    %1291 = vadd.xlane.f32.xlu0 %v1290
    %v1292 = vpop.xlane.xlu0 %1291
    %v1293 = vrcp.pop %v1289
    %v1294 = vrcp.pop %v1292
    %v1295 = vmul.f32 %v1284, %v1293
    %v1296 = vmul.f32 %v1286, %v1294
    %v1297 = vpack.c.bf16 %v1295, %v1295
    %v1298 = vpack.c.bf16 %v1296, %v1296
    %1299 = vrot.lane.b32.xlu0 %v1171, 64
    %v1300 = vpop.permute.xlu0 %1299
    %v1302 = vsel %vm346, %v1297, 0
    %v1305 = vsel %vm376, %v1300, 0
    %1307 = vmatprep.subr.bf16.mxu0 0
    %1308 = vmatpush1.bf16.msra.mxu0 0
    %1309 = vmatprep.subr.bf16.mxu0 0
    %1310 = vmatpush1.bf16.msra.mxu0 0
    %1311 = vmatprep.subr.bf16.mxu0 0
    %1312 = vmatpush1.bf16.msra.mxu0 0
    %1313 = vmatprep.subr.bf16.mxu0 0
    %1314 = vmatpush1.bf16.msra.mxu0 0
    %1315 = vmatprep.subr.bf16.mxu0 0
    %1316 = vmatpush1.bf16.msra.mxu0 0
    %1317 = vmatprep.subr.bf16.mxu0 0
    %1318 = vmatpush1.bf16.msra.mxu0 0
    %1319 = vmatprep.subr.bf16.mxu0 0
    %1320 = vmatpush1.bf16.msra.mxu0 0
    %1321 = vmatprep.subr.bf16.mxu0 0
    %1322 = vmatpush1.bf16.msra.mxu0 %v1305
    %1323 = vmatprep.subr.bf16.mxu0 0
    %1324 = vmatpush2.bf16.msra.mxu0 0
    %1325 = vmatprep.subr.bf16.mxu0 0
    %1326 = vmatpush2.bf16.msra.mxu0 0
    %1327 = vmatprep.subr.bf16.mxu0 0
    %1328 = vmatpush2.bf16.msra.mxu0 0
    %1329 = vmatprep.subr.bf16.mxu0 0
    %1330 = vmatpush2.bf16.msra.mxu0 0
    %1331 = vmatprep.subr.bf16.mxu0 0
    %1332 = vmatpush2.bf16.msra.mxu0 0
    %1333 = vmatprep.subr.bf16.mxu0 0
    %1334 = vmatpush2.bf16.msra.mxu0 0
    %1335 = vmatprep.subr.bf16.mxu0 0
    %1336 = vmatpush2.bf16.msra.mxu0 0
    %1337 = vmatprep.subr.bf16.mxu0 0
    %1338 = vmatpush2.bf16.msra.mxu0 0
    %1339 = vmatprep.mubr.bf16.mxu0 0
    %1340 = vmatmul.mubr.bf16.gmra.mxu0 %v1302
    %v1341 = vpop.f32.mrf.mxu0
    %v1342 = vadd.f32 0.0, %v1341
    %v1343 = vpop.f32.mrf.mxu0
    %v1344 = vpop.f32.mrf.mxu0
    %v1345 = vpop.f32.mrf.mxu0
    %1346 = vdwg.mxu0
    %1347 = vrot.lane.b32.xlu0 %v1172, 64
    %v1348 = vpop.permute.xlu0 %1347
    %v1350 = vsel %vm346, %v1298, 0
    %v1353 = vsel %vm376, %v1348, 0
    %1355 = vmatprep.subr.bf16.mxu0 0
    %1356 = vmatpush1.bf16.msra.mxu0 0
    %1357 = vmatprep.subr.bf16.mxu0 0
    %1358 = vmatpush1.bf16.msra.mxu0 0
    %1359 = vmatprep.subr.bf16.mxu0 0
    %1360 = vmatpush1.bf16.msra.mxu0 0
    %1361 = vmatprep.subr.bf16.mxu0 0
    %1362 = vmatpush1.bf16.msra.mxu0 0
    %1363 = vmatprep.subr.bf16.mxu0 0
    %1364 = vmatpush1.bf16.msra.mxu0 0
    %1365 = vmatprep.subr.bf16.mxu0 0
    %1366 = vmatpush1.bf16.msra.mxu0 0
    %1367 = vmatprep.subr.bf16.mxu0 0
    %1368 = vmatpush1.bf16.msra.mxu0 0
    %1369 = vmatprep.subr.bf16.mxu0 0
    %1370 = vmatpush1.bf16.msra.mxu0 %v1353
    %1371 = vmatprep.subr.bf16.mxu0 0
    %1372 = vmatpush2.bf16.msra.mxu0 0
    %1373 = vmatprep.subr.bf16.mxu0 0
    %1374 = vmatpush2.bf16.msra.mxu0 0
    %1375 = vmatprep.subr.bf16.mxu0 0
    %1376 = vmatpush2.bf16.msra.mxu0 0
    %1377 = vmatprep.subr.bf16.mxu0 0
    %1378 = vmatpush2.bf16.msra.mxu0 0
    %1379 = vmatprep.subr.bf16.mxu0 0
    %1380 = vmatpush2.bf16.msra.mxu0 0
    %1381 = vmatprep.subr.bf16.mxu0 0
    %1382 = vmatpush2.bf16.msra.mxu0 0
    %1383 = vmatprep.subr.bf16.mxu0 0
    %1384 = vmatpush2.bf16.msra.mxu0 0
    %1385 = vmatprep.subr.bf16.mxu0 0
    %1386 = vmatpush2.bf16.msra.mxu0 0
    %1387 = vmatprep.mubr.bf16.mxu0 0
    %1388 = vmatmul.mubr.bf16.gmra.mxu0 %v1350
    %v1389 = vpop.f32.mrf.mxu0
    %v1390 = vadd.f32 0.0, %v1389
    %v1391 = vpop.f32.mrf.mxu0
    %v1392 = vpop.f32.mrf.mxu0
    %v1393 = vpop.f32.mrf.mxu0
    %1394 = vdwg.mxu0
    %v1395 = vpack.c.bf16 %v1390, %v1342
    %1396 = vrot.lane.b32.xlu0 %v1171, 112
    %v1397 = vpop.permute.xlu0 %1396
    %1398 = vrot.lane.b32.xlu0 %v1171, 80
    %v1399 = vpop.permute.xlu0 %1398
    %v1401 = vsel %vm246, %v1397, 0
    %v1404 = vsel %vm246, %v1399, 0
    %1406 = vmatprep.subr.bf16.mxu0 0
    %1407 = vmatpush1.bf16.xpose.msra.mxu0 0
    %1408 = vmatprep.subr.bf16.mxu0 0
    %1409 = vmatpush1.bf16.xpose.msra.mxu0 0
    %1410 = vmatprep.subr.bf16.mxu0 0
    %1411 = vmatpush1.bf16.xpose.msra.mxu0 0
    %1412 = vmatprep.subr.bf16.mxu0 0
    %1413 = vmatpush1.bf16.xpose.msra.mxu0 0
    %1414 = vmatprep.subr.bf16.mxu0 0
    %1415 = vmatpush1.bf16.xpose.msra.mxu0 0
    %1416 = vmatprep.subr.bf16.mxu0 0
    %1417 = vmatpush1.bf16.xpose.msra.mxu0 0
    %1418 = vmatprep.subr.bf16.mxu0 0
    %1419 = vmatpush1.bf16.xpose.msra.mxu0 0
    %1420 = vmatprep.subr.bf16.mxu0 0
    %1421 = vmatpush1.bf16.xpose.msra.mxu0 %v1404
    %1422 = vmatprep.subr.bf16.mxu0 0
    %1423 = vmatpush2.bf16.xpose.msra.mxu0 0
    %1424 = vmatprep.subr.bf16.mxu0 0
    %1425 = vmatpush2.bf16.xpose.msra.mxu0 0
    %1426 = vmatprep.subr.bf16.mxu0 0
    %1427 = vmatpush2.bf16.xpose.msra.mxu0 0
    %1428 = vmatprep.subr.bf16.mxu0 0
    %1429 = vmatpush2.bf16.xpose.msra.mxu0 0
    %1430 = vmatprep.subr.bf16.mxu0 0
    %1431 = vmatpush2.bf16.xpose.msra.mxu0 0
    %1432 = vmatprep.subr.bf16.mxu0 0
    %1433 = vmatpush2.bf16.xpose.msra.mxu0 0
    %1434 = vmatprep.subr.bf16.mxu0 0
    %1435 = vmatpush2.bf16.xpose.msra.mxu0 0
    %1436 = vmatprep.subr.bf16.mxu0 0
    %1437 = vmatpush2.bf16.xpose.msra.mxu0 0
    %1438 = vmatprep.mubr.bf16.mxu0 0
    %1439 = vmatmul.mubr.bf16.gmra.mxu0 %v1401
    %v1440 = vpop.f32.mrf.mxu0
    %v1441 = vadd.f32 0.0, %v1440
    %v1442 = vpop.f32.mrf.mxu0
    %v1443 = vpop.f32.mrf.mxu0
    %v1444 = vpop.f32.mrf.mxu0
    %1445 = vdwg.mxu0
    %1446 = vrot.lane.b32.xlu0 %v1172, 112
    %v1447 = vpop.permute.xlu0 %1446
    %1448 = vrot.lane.b32.xlu0 %v1172, 80
    %v1449 = vpop.permute.xlu0 %1448
    %v1451 = vsel %vm246, %v1447, 0
    %v1454 = vsel %vm246, %v1449, 0
    %1456 = vmatprep.subr.bf16.mxu0 0
    %1457 = vmatpush1.bf16.xpose.msra.mxu0 0
    %1458 = vmatprep.subr.bf16.mxu0 0
    %1459 = vmatpush1.bf16.xpose.msra.mxu0 0
    %1460 = vmatprep.subr.bf16.mxu0 0
    %1461 = vmatpush1.bf16.xpose.msra.mxu0 0
    %1462 = vmatprep.subr.bf16.mxu0 0
    %1463 = vmatpush1.bf16.xpose.msra.mxu0 0
    %1464 = vmatprep.subr.bf16.mxu0 0
    %1465 = vmatpush1.bf16.xpose.msra.mxu0 0
    %1466 = vmatprep.subr.bf16.mxu0 0
    %1467 = vmatpush1.bf16.xpose.msra.mxu0 0
    %1468 = vmatprep.subr.bf16.mxu0 0
    %1469 = vmatpush1.bf16.xpose.msra.mxu0 0
    %1470 = vmatprep.subr.bf16.mxu0 0
    %1471 = vmatpush1.bf16.xpose.msra.mxu0 %v1454
    %1472 = vmatprep.subr.bf16.mxu0 0
    %1473 = vmatpush2.bf16.xpose.msra.mxu0 0
    %1474 = vmatprep.subr.bf16.mxu0 0
    %1475 = vmatpush2.bf16.xpose.msra.mxu0 0
    %1476 = vmatprep.subr.bf16.mxu0 0
    %1477 = vmatpush2.bf16.xpose.msra.mxu0 0
    %1478 = vmatprep.subr.bf16.mxu0 0
    %1479 = vmatpush2.bf16.xpose.msra.mxu0 0
    %1480 = vmatprep.subr.bf16.mxu0 0
    %1481 = vmatpush2.bf16.xpose.msra.mxu0 0
    %1482 = vmatprep.subr.bf16.mxu0 0
    %1483 = vmatpush2.bf16.xpose.msra.mxu0 0
    %1484 = vmatprep.subr.bf16.mxu0 0
    %1485 = vmatpush2.bf16.xpose.msra.mxu0 0
    %1486 = vmatprep.subr.bf16.mxu0 0
    %1487 = vmatpush2.bf16.xpose.msra.mxu0 0
    %1488 = vmatprep.mubr.bf16.mxu0 0
    %1489 = vmatmul.mubr.bf16.gmra.mxu0 %v1451
    %v1490 = vpop.f32.mrf.mxu0
    %v1491 = vadd.f32 0.0, %v1490
    %v1492 = vpop.f32.mrf.mxu0
    %v1493 = vpop.f32.mrf.mxu0
    %v1494 = vpop.f32.mrf.mxu0
    %1495 = vdwg.mxu0
    %v1496 = vmul.f32 %v1441, 0.25
    %v1497 = vmul.f32 %v1491, 0.25
    %v1498 = vsel %vm121, %v1496, -1e+09
    %v1499 = vsel %vm122, %v1497, -1e+09
    %v1500 = vsel %vm346, %v1498, -inf
    %1501 = vmax.xlane.f32.xlu0 %v1500
    %v1502 = vpop.xlane.xlu0 %1501
    %v1503 = vsel %vm346, %v1499, -inf
    %1504 = vmax.xlane.f32.xlu0 %v1503
    %v1505 = vpop.xlane.xlu0 %1504
    %v1506 = vsub.f32 %v1498, %v1502
    %v1507 = vsub.f32 %v1499, %v1505
    %v1508 = vmul.f32 %v1506, 1.442695
    %v1509 = vpow.pop %v1508
    %v1510 = vmul.f32 %v1507, 1.442695
    %v1511 = vpow.pop %v1510
    %v1512 = vsel %vm346, %v1509, 0.0
    %1513 = vadd.xlane.f32.xlu0 %v1512
    %v1514 = vpop.xlane.xlu0 %1513
    %v1515 = vsel %vm346, %v1511, 0.0
    %1516 = vadd.xlane.f32.xlu0 %v1515
    %v1517 = vpop.xlane.xlu0 %1516
    %v1518 = vrcp.pop %v1514
    %v1519 = vrcp.pop %v1517
    %v1520 = vmul.f32 %v1509, %v1518
    %v1521 = vmul.f32 %v1511, %v1519
    %v1522 = vpack.c.bf16 %v1520, %v1520
    %v1523 = vpack.c.bf16 %v1521, %v1521
    %1524 = vrot.lane.b32.xlu0 %v1171, 48
    %v1525 = vpop.permute.xlu0 %1524
    %v1527 = vsel %vm346, %v1522, 0
    %v1530 = vsel %vm376, %v1525, 0
    %1532 = vmatprep.subr.bf16.mxu0 0
    %1533 = vmatpush1.bf16.msra.mxu0 0
    %1534 = vmatprep.subr.bf16.mxu0 0
    %1535 = vmatpush1.bf16.msra.mxu0 0
    %1536 = vmatprep.subr.bf16.mxu0 0
    %1537 = vmatpush1.bf16.msra.mxu0 0
    %1538 = vmatprep.subr.bf16.mxu0 0
    %1539 = vmatpush1.bf16.msra.mxu0 0
    %1540 = vmatprep.subr.bf16.mxu0 0
    %1541 = vmatpush1.bf16.msra.mxu0 0
    %1542 = vmatprep.subr.bf16.mxu0 0
    %1543 = vmatpush1.bf16.msra.mxu0 0
    %1544 = vmatprep.subr.bf16.mxu0 0
    %1545 = vmatpush1.bf16.msra.mxu0 0
    %1546 = vmatprep.subr.bf16.mxu0 0
    %1547 = vmatpush1.bf16.msra.mxu0 %v1530
    %1548 = vmatprep.subr.bf16.mxu0 0
    %1549 = vmatpush2.bf16.msra.mxu0 0
    %1550 = vmatprep.subr.bf16.mxu0 0
    %1551 = vmatpush2.bf16.msra.mxu0 0
    %1552 = vmatprep.subr.bf16.mxu0 0
    %1553 = vmatpush2.bf16.msra.mxu0 0
    %1554 = vmatprep.subr.bf16.mxu0 0
    %1555 = vmatpush2.bf16.msra.mxu0 0
    %1556 = vmatprep.subr.bf16.mxu0 0
    %1557 = vmatpush2.bf16.msra.mxu0 0
    %1558 = vmatprep.subr.bf16.mxu0 0
    %1559 = vmatpush2.bf16.msra.mxu0 0
    %1560 = vmatprep.subr.bf16.mxu0 0
    %1561 = vmatpush2.bf16.msra.mxu0 0
    %1562 = vmatprep.subr.bf16.mxu0 0
    %1563 = vmatpush2.bf16.msra.mxu0 0
    %1564 = vmatprep.mubr.bf16.mxu0 0
    %1565 = vmatmul.mubr.bf16.gmra.mxu0 %v1527
    %v1566 = vpop.f32.mrf.mxu0
    %v1567 = vadd.f32 0.0, %v1566
    %v1568 = vpop.f32.mrf.mxu0
    %v1569 = vpop.f32.mrf.mxu0
    %v1570 = vpop.f32.mrf.mxu0
    %1571 = vdwg.mxu0
    %1572 = vrot.lane.b32.xlu0 %v1172, 48
    %v1573 = vpop.permute.xlu0 %1572
    %v1575 = vsel %vm346, %v1523, 0
    %v1578 = vsel %vm376, %v1573, 0
    %1580 = vmatprep.subr.bf16.mxu0 0
    %1581 = vmatpush1.bf16.msra.mxu0 0
    %1582 = vmatprep.subr.bf16.mxu0 0
    %1583 = vmatpush1.bf16.msra.mxu0 0
    %1584 = vmatprep.subr.bf16.mxu0 0
    %1585 = vmatpush1.bf16.msra.mxu0 0
    %1586 = vmatprep.subr.bf16.mxu0 0
    %1587 = vmatpush1.bf16.msra.mxu0 0
    %1588 = vmatprep.subr.bf16.mxu0 0
    %1589 = vmatpush1.bf16.msra.mxu0 0
    %1590 = vmatprep.subr.bf16.mxu0 0
    %1591 = vmatpush1.bf16.msra.mxu0 0
    %1592 = vmatprep.subr.bf16.mxu0 0
    %1593 = vmatpush1.bf16.msra.mxu0 0
    %1594 = vmatprep.subr.bf16.mxu0 0
    %1595 = vmatpush1.bf16.msra.mxu0 %v1578
    %1596 = vmatprep.subr.bf16.mxu0 0
    %1597 = vmatpush2.bf16.msra.mxu0 0
    %1598 = vmatprep.subr.bf16.mxu0 0
    %1599 = vmatpush2.bf16.msra.mxu0 0
    %1600 = vmatprep.subr.bf16.mxu0 0
    %1601 = vmatpush2.bf16.msra.mxu0 0
    %1602 = vmatprep.subr.bf16.mxu0 0
    %1603 = vmatpush2.bf16.msra.mxu0 0
    %1604 = vmatprep.subr.bf16.mxu0 0
    %1605 = vmatpush2.bf16.msra.mxu0 0
    %1606 = vmatprep.subr.bf16.mxu0 0
    %1607 = vmatpush2.bf16.msra.mxu0 0
    %1608 = vmatprep.subr.bf16.mxu0 0
    %1609 = vmatpush2.bf16.msra.mxu0 0
    %1610 = vmatprep.subr.bf16.mxu0 0
    %1611 = vmatpush2.bf16.msra.mxu0 0
    %1612 = vmatprep.mubr.bf16.mxu0 0
    %1613 = vmatmul.mubr.bf16.gmra.mxu0 %v1575
    %v1614 = vpop.f32.mrf.mxu0
    %v1615 = vadd.f32 0.0, %v1614
    %v1616 = vpop.f32.mrf.mxu0
    %v1617 = vpop.f32.mrf.mxu0
    %v1618 = vpop.f32.mrf.mxu0
    %1619 = vdwg.mxu0
    %v1620 = vpack.c.bf16 %v1615, %v1567
    %v1623 = vunpack.c.l.b16 %v1169
    %v1624 = vunpack.c.l.b16 %v1170
    %v1625 = vpack.c.b16 %v1624, %v1623
    %v1628 = vsel %vm246, %v1620, 0
    %1630 = vmatprep.subr.bf16.mxu0 0
    %1631 = vmatpush1.bf16.msra.mxu0 0
    %1632 = vmatprep.subr.bf16.mxu0 0
    %1633 = vmatpush1.bf16.msra.mxu0 0
    %1634 = vmatprep.subr.bf16.mxu0 0
    %1635 = vmatpush1.bf16.msra.mxu0 0
    %1636 = vmatprep.subr.bf16.mxu0 0
    %1637 = vmatpush1.bf16.msra.mxu0 0
    %1638 = vmatprep.subr.bf16.mxu0 0
    %1639 = vmatpush1.bf16.msra.mxu0 0
    %1640 = vmatprep.subr.bf16.mxu0 0
    %1641 = vmatpush1.bf16.msra.mxu0 0
    %1642 = vmatprep.subr.bf16.mxu0 0
    %1643 = vmatpush1.bf16.msra.mxu0 0
    %1644 = vmatprep.subr.bf16.mxu0 0
    %1645 = vmatpush1.bf16.msra.mxu0 %v1625
    %1646 = vmatprep.subr.bf16.mxu0 0
    %1647 = vmatpush2.bf16.msra.mxu0 0
    %1648 = vmatprep.subr.bf16.mxu0 0
    %1649 = vmatpush2.bf16.msra.mxu0 0
    %1650 = vmatprep.subr.bf16.mxu0 0
    %1651 = vmatpush2.bf16.msra.mxu0 0
    %1652 = vmatprep.subr.bf16.mxu0 0
    %1653 = vmatpush2.bf16.msra.mxu0 0
    %1654 = vmatprep.subr.bf16.mxu0 0
    %1655 = vmatpush2.bf16.msra.mxu0 0
    %1656 = vmatprep.subr.bf16.mxu0 0
    %1657 = vmatpush2.bf16.msra.mxu0 0
    %1658 = vmatprep.subr.bf16.mxu0 0
    %1659 = vmatpush2.bf16.msra.mxu0 0
    %1660 = vmatprep.subr.bf16.mxu0 0
    %1661 = vmatpush2.bf16.msra.mxu0 0
    %1662 = vmatprep.mubr.bf16.mxu0 0
    %1663 = vmatmul.mubr.bf16.gmra.mxu0 %v1628
    %v1664 = vpop.f32.mrf.mxu0
    %v1665 = vadd.f32 0.0, %v1664
    %v1666 = vpop.f32.mrf.mxu0
    %v1667 = vpop.f32.mrf.mxu0
    %v1668 = vadd.f32 0.0, %v1667
    %v1669 = vpop.f32.mrf.mxu0
    %1670 = vdwg.mxu0
    %v1673 = vunpack.c.l.b16 %v1167
    %v1674 = vunpack.c.l.b16 %v1168
    %v1675 = vpack.c.b16 %v1674, %v1673
    %v1678 = vsel %vm246, %v1395, 0
    %1680 = vmatprep.subr.bf16.mxu0 0
    %1681 = vmatpush1.bf16.msra.mxu0 0
    %1682 = vmatprep.subr.bf16.mxu0 0
    %1683 = vmatpush1.bf16.msra.mxu0 0
    %1684 = vmatprep.subr.bf16.mxu0 0
    %1685 = vmatpush1.bf16.msra.mxu0 0
    %1686 = vmatprep.subr.bf16.mxu0 0
    %1687 = vmatpush1.bf16.msra.mxu0 0
    %1688 = vmatprep.subr.bf16.mxu0 0
    %1689 = vmatpush1.bf16.msra.mxu0 0
    %1690 = vmatprep.subr.bf16.mxu0 0
    %1691 = vmatpush1.bf16.msra.mxu0 0
    %1692 = vmatprep.subr.bf16.mxu0 0
    %1693 = vmatpush1.bf16.msra.mxu0 0
    %1694 = vmatprep.subr.bf16.mxu0 0
    %1695 = vmatpush1.bf16.msra.mxu0 %v1675
    %1696 = vmatprep.subr.bf16.mxu0 0
    %1697 = vmatpush2.bf16.msra.mxu0 0
    %1698 = vmatprep.subr.bf16.mxu0 0
    %1699 = vmatpush2.bf16.msra.mxu0 0
    %1700 = vmatprep.subr.bf16.mxu0 0
    %1701 = vmatpush2.bf16.msra.mxu0 0
    %1702 = vmatprep.subr.bf16.mxu0 0
    %1703 = vmatpush2.bf16.msra.mxu0 0
    %1704 = vmatprep.subr.bf16.mxu0 0
    %1705 = vmatpush2.bf16.msra.mxu0 0
    %1706 = vmatprep.subr.bf16.mxu0 0
    %1707 = vmatpush2.bf16.msra.mxu0 0
    %1708 = vmatprep.subr.bf16.mxu0 0
    %1709 = vmatpush2.bf16.msra.mxu0 0
    %1710 = vmatprep.subr.bf16.mxu0 0
    %1711 = vmatpush2.bf16.msra.mxu0 0
    %1712 = vmatprep.mubr.bf16.mxu0 0
    %1713 = vmatmul.mubr.bf16.gmra.mxu0 %v1678
    %v1714 = vpop.f32.mrf.mxu0
    %v1715 = vadd.f32 %v1665, %v1714
    %v1716 = vpop.f32.mrf.mxu0
    %v1717 = vpop.f32.mrf.mxu0
    %v1718 = vadd.f32 %v1668, %v1717
    %v1719 = vpop.f32.mrf.mxu0
    %1720 = vdwg.mxu0
    %v1721 = vadd.f32 %v1048, %v1715
    %v1722 = vadd.f32 %v1049, %v1718
    %s1723 = scalar_lea.vmem %s8, 1
    %v1724 = vld [vmem:[%s1723] sm:$0x1]
    %v1726 = vlaneseq
    %v1727 = vshrl.u32 %v1726, 7
    %v1728 = vsub.s32 0, %v1727
    %v1729 = vrot.slane %v1724, %v1728
    %v1731 = vadd.f32 %v1721, %v1729
    %v1732 = vadd.f32 %v1722, %v1729
    %s1733 = scalar_lea.vmem %s9, 1
    %v1734 = vld [vmem:[%s1733] sm:$0x1]
    %s1735 = scalar_lea.vmem %s10, 1
    %v1736 = vld [vmem:[%s1735] sm:$0x1]
    %v1737 = vsel %vm125, %v1731, 0.0
    %1738 = vadd.xlane.f32.xlu0 %v1737
    %v1739 = vpop.xlane.xlu0 %1738
    %v1740 = vsel %vm125, %v1732, 0.0
    %1741 = vadd.xlane.f32.xlu0 %v1740
    %v1742 = vpop.xlane.xlu0 %1741
    %v1743 = vmul.f32 %v1739, %v132
    %v1744 = vmul.f32 %v1742, %v132
    %v1745 = vsub.f32 %v1731, %v1743
    %v1746 = vsub.f32 %v1732, %v1744
    %v1747 = vmul.f32 %v1745, %v1745
    %v1748 = vmul.f32 %v1746, %v1746
    %v1749 = vsel %vm125, %v1747, 0.0
    %1750 = vadd.xlane.f32.xlu0 %v1749
    %v1751 = vpop.xlane.xlu0 %1750
    %v1752 = vsel %vm125, %v1748, 0.0
    %1753 = vadd.xlane.f32.xlu0 %v1752
    %v1754 = vpop.xlane.xlu0 %1753
    %v1755 = vmul.f32 %v1751, %v132
    %v1756 = vmul.f32 %v1754, %v132
    %v1757 = vadd.f32 %v1755, 1e-05
    %v1758 = vadd.f32 %v1756, 1e-05
    %v1759 = vrsqrt.pop %v1757
    %v1760 = vrsqrt.pop %v1758
    %v1761 = vmul.f32 %v1745, %v1759
    %v1762 = vmul.f32 %v1746, %v1760
    %v1764 = vlaneseq
    %v1765 = vshrl.u32 %v1764, 7
    %v1766 = vsub.s32 0, %v1765
    %v1767 = vrot.slane %v1734, %v1766
    %v1769 = vmul.f32 %v1761, %v1767
    %v1770 = vmul.f32 %v1762, %v1767
    %v1772 = vlaneseq
    %v1773 = vshrl.u32 %v1772, 7
    %v1774 = vsub.s32 0, %v1773
    %v1775 = vrot.slane %v1736, %v1774
    %v1777 = vadd.f32 %v1769, %v1775
    %v1778 = vadd.f32 %v1770, %v1775
    %v1779 = vpack.c.bf16 %v1778, %v1777
    %s1780 = scalar_lea.vmem %s11, 16
    %v1781 = vld [vmem:[%s1780] sm:$0xf]
    %v1782 = vld [vmem:[%s1780 + $0x4] sm:$0xf]
    %v1783 = vld [vmem:[%s1780 + $0x8] sm:$0xf]
    %v1784 = vld [vmem:[%s1780 + $0xc] sm:$0xf]
    %s1785 = scalar_lea.vmem %s12, 1
    %v1786 = vld [vmem:[%s1785] sm:$0x1]
    %v1788 = vlaneseq
    %v1789 = vshrl.u32 %v1788, 7
    %v1790 = vsub.s32 0, %v1789
    %v1791 = vrot.slane %v1786, %v1790
    %v1797 = vunpack.c.l.b16 %v1781
    %v1798 = vunpack.c.l.b16 %v1782
    %v1799 = vunpack.c.l.b16 %v1783
    %v1800 = vunpack.c.l.b16 %v1784
    %v1801 = vpack.c.b16 %v1798, %v1797
    %v1802 = vpack.c.b16 %v1800, %v1799
    %v1806 = vsel %vm125, %v1779, 0
    %1808 = vmatprep.subr.bf16.mxu0 0
    %1809 = vmatpush1.bf16.msra.mxu0 0
    %1810 = vmatprep.subr.bf16.mxu0 0
    %1811 = vmatpush1.bf16.msra.mxu0 0
    %1812 = vmatprep.subr.bf16.mxu0 0
    %1813 = vmatpush1.bf16.msra.mxu0 0
    %1814 = vmatprep.subr.bf16.mxu0 0
    %1815 = vmatpush1.bf16.msra.mxu0 0
    %1816 = vmatprep.subr.bf16.mxu0 0
    %1817 = vmatpush1.bf16.msra.mxu0 0
    %1818 = vmatprep.subr.bf16.mxu0 0
    %1819 = vmatpush1.bf16.msra.mxu0 0
    %1820 = vmatprep.subr.bf16.mxu0 0
    %1821 = vmatpush1.bf16.msra.mxu0 %v1802
    %1822 = vmatprep.subr.bf16.mxu0 0
    %1823 = vmatpush1.bf16.msra.mxu0 %v1801
    %1824 = vmatprep.subr.bf16.mxu0 0
    %1825 = vmatpush2.bf16.msra.mxu0 0
    %1826 = vmatprep.subr.bf16.mxu0 0
    %1827 = vmatpush2.bf16.msra.mxu0 0
    %1828 = vmatprep.subr.bf16.mxu0 0
    %1829 = vmatpush2.bf16.msra.mxu0 0
    %1830 = vmatprep.subr.bf16.mxu0 0
    %1831 = vmatpush2.bf16.msra.mxu0 0
    %1832 = vmatprep.subr.bf16.mxu0 0
    %1833 = vmatpush2.bf16.msra.mxu0 0
    %1834 = vmatprep.subr.bf16.mxu0 0
    %1835 = vmatpush2.bf16.msra.mxu0 0
    %1836 = vmatprep.subr.bf16.mxu0 0
    %1837 = vmatpush2.bf16.msra.mxu0 0
    %1838 = vmatprep.subr.bf16.mxu0 0
    %1839 = vmatpush2.bf16.msra.mxu0 0
    %1840 = vmatprep.mubr.bf16.mxu0 0
    %1841 = vmatmul.mubr.bf16.gmra.mxu0 %v1806
    %v1842 = vpop.f32.mrf.mxu0
    %v1843 = vadd.f32 %v1791, %v1842
    %v1844 = vpop.f32.mrf.mxu0
    %v1845 = vpop.f32.mrf.mxu0
    %v1846 = vadd.f32 %v1791, %v1845
    %v1847 = vpop.f32.mrf.mxu0
    %1848 = vdwg.mxu0
    %v1849 = vmul.f32 %v1843, 0.5
    %v1850 = vmul.f32 %v1846, 0.5
    %v1851 = vmul.f32 %v1843, 0.044715
    %v1852 = vmul.f32 %v1846, 0.044715
    %v1853 = vmul.f32 %v1851, %v1843
    %v1854 = vmul.f32 %v1852, %v1846
    %v1855 = vmul.f32 %v1853, %v1843
    %v1856 = vmul.f32 %v1854, %v1846
    %v1857 = vadd.f32 %v1843, %v1855
    %v1858 = vadd.f32 %v1846, %v1856
    %v1859 = vmul.f32 %v1857, 0.7978846
    %v1860 = vmul.f32 %v1858, 0.7978846
    %v1861 = vtanh.pop %v1859
    %v1862 = vtanh.pop %v1860
    %v1863 = vadd.f32 %v1861, 1.0
    %v1864 = vadd.f32 %v1862, 1.0
    %v1865 = vmul.f32 %v1849, %v1863
    %v1866 = vmul.f32 %v1850, %v1864
    %v1867 = vpack.c.bf16 %v1866, %v1865
    %s1868 = scalar_lea.vmem %s13, 64
    %v1869 = vld [vmem:[%s1868] sm:$0xf]
    %v1870 = vld [vmem:[%s1868 + $0x4] sm:$0xf]
    %v1871 = vld [vmem:[%s1868 + $0x8] sm:$0xf]
    %v1872 = vld [vmem:[%s1868 + $0xc] sm:$0xf]
    %v1873 = vld [vmem:[%s1868 + $0x10] sm:$0xf]
    %v1874 = vld [vmem:[%s1868 + $0x14] sm:$0xf]
    %v1875 = vld [vmem:[%s1868 + $0x18] sm:$0xf]
    %v1876 = vld [vmem:[%s1868 + $0x1c] sm:$0xf]
    %v1877 = vld [vmem:[%s1868 + $0x20] sm:$0xf]
    %v1878 = vld [vmem:[%s1868 + $0x24] sm:$0xf]
    %v1879 = vld [vmem:[%s1868 + $0x28] sm:$0xf]
    %v1880 = vld [vmem:[%s1868 + $0x2c] sm:$0xf]
    %v1881 = vld [vmem:[%s1868 + $0x30] sm:$0xf]
    %v1882 = vld [vmem:[%s1868 + $0x34] sm:$0xf]
    %v1883 = vld [vmem:[%s1868 + $0x38] sm:$0xf]
    %v1884 = vld [vmem:[%s1868 + $0x3c] sm:$0xf]
    %s1885 = scalar_lea.vmem %s14, 1
    %v1886 = vld [vmem:[%s1885] sm:$0x1]
    %v1888 = vlaneseq
    %v1889 = vshrl.u32 %v1888, 7
    %v1890 = vsub.s32 0, %v1889
    %v1891 = vrot.slane %v1886, %v1890
    %v1909 = vunpack.c.l.b16 %v1869
    %v1910 = vunpack.c.l.b16 %v1870
    %v1911 = vunpack.c.l.b16 %v1871
    %v1912 = vunpack.c.l.b16 %v1872
    %v1913 = vunpack.c.l.b16 %v1873
    %v1914 = vunpack.c.l.b16 %v1874
    %v1915 = vunpack.c.l.b16 %v1875
    %v1916 = vunpack.c.l.b16 %v1876
    %v1917 = vunpack.c.l.b16 %v1877
    %v1918 = vunpack.c.l.b16 %v1878
    %v1919 = vunpack.c.l.b16 %v1879
    %v1920 = vunpack.c.l.b16 %v1880
    %v1921 = vunpack.c.l.b16 %v1881
    %v1922 = vunpack.c.l.b16 %v1882
    %v1923 = vunpack.c.l.b16 %v1883
    %v1924 = vunpack.c.l.b16 %v1884
    %v1925 = vpack.c.b16 %v1910, %v1909
    %v1926 = vpack.c.b16 %v1912, %v1911
    %v1927 = vpack.c.b16 %v1914, %v1913
    %v1928 = vpack.c.b16 %v1916, %v1915
    %v1929 = vpack.c.b16 %v1918, %v1917
    %v1930 = vpack.c.b16 %v1920, %v1919
    %v1931 = vpack.c.b16 %v1922, %v1921
    %v1932 = vpack.c.b16 %v1924, %v1923
    %1941 = vmatprep.subr.bf16.mxu0 0
    %1942 = vmatpush1.bf16.msra.mxu0 %v1932
    %1943 = vmatprep.subr.bf16.mxu0 0
    %1944 = vmatpush1.bf16.msra.mxu0 %v1931
    %1945 = vmatprep.subr.bf16.mxu0 0
    %1946 = vmatpush1.bf16.msra.mxu0 %v1930
    %1947 = vmatprep.subr.bf16.mxu0 0
    %1948 = vmatpush1.bf16.msra.mxu0 %v1929
    %1949 = vmatprep.subr.bf16.mxu0 0
    %1950 = vmatpush1.bf16.msra.mxu0 %v1928
    %1951 = vmatprep.subr.bf16.mxu0 0
    %1952 = vmatpush1.bf16.msra.mxu0 %v1927
    %1953 = vmatprep.subr.bf16.mxu0 0
    %1954 = vmatpush1.bf16.msra.mxu0 %v1926
    %1955 = vmatprep.subr.bf16.mxu0 0
    %1956 = vmatpush1.bf16.msra.mxu0 %v1925
    %1957 = vmatprep.subr.bf16.mxu0 0
    %1958 = vmatpush2.bf16.msra.mxu0 0
    %1959 = vmatprep.subr.bf16.mxu0 0
    %1960 = vmatpush2.bf16.msra.mxu0 0
    %1961 = vmatprep.subr.bf16.mxu0 0
    %1962 = vmatpush2.bf16.msra.mxu0 0
    %1963 = vmatprep.subr.bf16.mxu0 0
    %1964 = vmatpush2.bf16.msra.mxu0 0
    %1965 = vmatprep.subr.bf16.mxu0 0
    %1966 = vmatpush2.bf16.msra.mxu0 0
    %1967 = vmatprep.subr.bf16.mxu0 0
    %1968 = vmatpush2.bf16.msra.mxu0 0
    %1969 = vmatprep.subr.bf16.mxu0 0
    %1970 = vmatpush2.bf16.msra.mxu0 0
    %1971 = vmatprep.subr.bf16.mxu0 0
    %1972 = vmatpush2.bf16.msra.mxu0 0
    %1973 = vmatprep.mubr.bf16.mxu0 0
    %1974 = vmatmul.mubr.bf16.gmra.mxu0 %v1867
    %v1975 = vpop.f32.mrf.mxu0
    %v1976 = vadd.f32 %v1891, %v1975
    %v1977 = vpop.f32.mrf.mxu0
    %v1978 = vpop.f32.mrf.mxu0
    %v1979 = vadd.f32 %v1891, %v1978
    %v1980 = vpop.f32.mrf.mxu0
    %1981 = vdwg.mxu0
    %v1982 = vadd.f32 %v1731, %v1976
    %v1983 = vadd.f32 %v1732, %v1979
    %1984 = vst.msk [vmem:[#allocation2] sm:$0xff] %vm125, %v1982
    %1985 = vst.msk [vmem:[#allocation2 + $0x8] sm:$0xff] %vm125, %v1983
    %1986 = vst.msk [vmem:[#allocation3] sm:$0xff] %vm125, 0.0
    %s1987 = sld [smem:[#allocation4]]
    %s1988 = scalar_lea.vmem [#allocation2], %s1987
    %v1989 = vld [vmem:[%s1988] sm:$0x1]
    %vm1990 = vcmask 253952
    %1991 = vst.msk [vmem:[#allocation3] sm:$0x1] %vm1990, %v1989
    %s1992 = sld [smem:[#allocation4 + $0x1]]
    %s1993 = sadd.s32 %s1992, 8
    %s1994 = scalar_lea.vmem [#allocation2], %s1993
    %v1995 = vld [vmem:[%s1994] sm:$0x1]
    %1996 = vst.msk [vmem:[#allocation3 + $0x1] sm:$0x1] %vm1990, %v1995
    %v1997 = vld [vmem:[#allocation3] sm:$0xff]
    %v1998 = vld [vmem:[%s15] sm:$0x1]
    %v1999 = vld [vmem:[%s16] sm:$0x1]
    %v2000 = vsel %vm125, %v1997, 0.0
    %2001 = vadd.xlane.f32.xlu0 %v2000
    %v2002 = vpop.xlane.xlu0 %2001
    %v2003 = vmul.f32 %v2002, %v132
    %v2004 = vsub.f32 %v1997, %v2003
    %v2005 = vmul.f32 %v2004, %v2004
    %v2006 = vsel %vm125, %v2005, 0.0
    %2007 = vadd.xlane.f32.xlu0 %v2006
    %v2008 = vpop.xlane.xlu0 %2007
    %v2009 = vmul.f32 %v2008, %v132
    %v2010 = vadd.f32 %v2009, 1e-05
    %v2011 = vrsqrt.pop %v2010
    %v2012 = vmul.f32 %v2004, %v2011
    %v2014 = vlaneseq
    %v2015 = vshrl.u32 %v2014, 7
    %v2016 = vsub.s32 0, %v2015
    %v2017 = vrot.slane %v1998, %v2016
    %v2019 = vmul.f32 %v2012, %v2017
    %v2021 = vlaneseq
    %v2022 = vshrl.u32 %v2021, 7
    %v2023 = vsub.s32 0, %v2022
    %v2024 = vrot.slane %v1999, %v2023
    %v2026 = vadd.f32 %v2019, %v2024
    %v2027 = vpack.c.bf16 %v2026, %v2026
    %v2028 = vld [vmem:[%s17] sm:$0xff]
    %v2029 = vld [vmem:[%s17 + $0x8] sm:$0xff]
    %v2030 = vld [vmem:[%s17 + $0x10] sm:$0xff]
    %v2031 = vld [vmem:[%s17 + $0x18] sm:$0xff]
    %v2036 = vunpack.c.l.b16 %v2028
    %v2037 = vunpack.c.h.b16 %v2028
    %v2038 = vunpack.c.l.b16 %v2029
    %v2039 = vunpack.c.h.b16 %v2029
    %v2040 = vunpack.c.l.b16 %v2030
    %v2041 = vunpack.c.h.b16 %v2030
    %v2042 = vunpack.c.l.b16 %v2031
    %v2043 = vunpack.c.h.b16 %v2031
    %v2044 = vpack.c.b16 %v2038, %v2036
    %v2045 = vpack.c.b16 %v2039, %v2037
    %v2046 = vpack.c.b16 %v2042, %v2040
    %v2047 = vpack.c.b16 %v2043, %v2041
    %v2053 = vsel %vm125, %v2027, 0
    %2055 = vmatprep.subr.bf16.mxu0 0
    %2056 = vmatpush1.bf16.msra.mxu0 0
    %2057 = vmatprep.subr.bf16.mxu0 0
    %2058 = vmatpush1.bf16.msra.mxu0 0
    %2059 = vmatprep.subr.bf16.mxu0 0
    %2060 = vmatpush1.bf16.msra.mxu0 0
    %2061 = vmatprep.subr.bf16.mxu0 0
    %2062 = vmatpush1.bf16.msra.mxu0 0
    %2063 = vmatprep.subr.bf16.mxu0 0
    %2064 = vmatpush1.bf16.msra.mxu0 0
    %2065 = vmatprep.subr.bf16.mxu0 0
    %2066 = vmatpush1.bf16.msra.mxu0 0
    %2067 = vmatprep.subr.bf16.mxu0 %v2047
    %2068 = vmatpush1.bf16.msra.mxu0 %v2046
    %2069 = vmatprep.subr.bf16.mxu0 %v2045
    %2070 = vmatpush1.bf16.msra.mxu0 %v2044
    %2071 = vmatprep.subr.bf16.mxu0 0
    %2072 = vmatpush2.bf16.msra.mxu0 0
    %2073 = vmatprep.subr.bf16.mxu0 0
    %2074 = vmatpush2.bf16.msra.mxu0 0
    %2075 = vmatprep.subr.bf16.mxu0 0
    %2076 = vmatpush2.bf16.msra.mxu0 0
    %2077 = vmatprep.subr.bf16.mxu0 0
    %2078 = vmatpush2.bf16.msra.mxu0 0
    %2079 = vmatprep.subr.bf16.mxu0 0
    %2080 = vmatpush2.bf16.msra.mxu0 0
    %2081 = vmatprep.subr.bf16.mxu0 0
    %2082 = vmatpush2.bf16.msra.mxu0 0
    %2083 = vmatprep.subr.bf16.mxu0 0
    %2084 = vmatpush2.bf16.msra.mxu0 0
    %2085 = vmatprep.subr.bf16.mxu0 0
    %2086 = vmatpush2.bf16.msra.mxu0 0
    %2087 = vmatprep.mubr.bf16.mxu0 0
    %2088 = vmatmul.mubr.bf16.gmra.mxu0 %v2053
    %v2089 = vpop.f32.mrf.mxu0
    %v2090 = vadd.f32 0.0, %v2089
    %v2091 = vpop.f32.mrf.mxu0
    %v2092 = vadd.f32 0.0, %v2091
    %v2093 = vpop.f32.mrf.mxu0
    %v2094 = vpop.f32.mrf.mxu0
    %2095 = vdwg.mxu0
    %2096 = vst [vmem:[%s18] sm:$0xff] %v2090
    %2097 = vst [vmem:[%s18 + $0x8] sm:$0xff] %v2092
    // Predicated region
    $region78: #{sender_forward.1} parent=1 // pred_check
      _
    $region79: #{sender_forward.1} parent=1 // pred_check_branch
      %2099 = sbr.rel (0) target = $region81
    $region80: #{sender_forward.1} parent=1 // pred_region
      _
    $region81: #{sender_forward.1} parent=1 // pred_fallthru
      _
    // Predicated region
    $region82: #{sender_forward.1} parent=1 // pred_check
      _
    $region83: #{sender_forward.1} parent=1 // pred_check_branch
      %2101 = sbr.rel (0) target = $region85
    $region84: #{sender_forward.1} parent=1 // pred_region
      _
    $region85: #{sender_forward.1} parent=1 // pred_fallthru
      _
    %2102 = vsyncpa [#allocation5], 1

</llo_original>
